<compile_context>
chip_gen: v7x
topology: tpu7x:2x2x1
jax: 0.10.0
libtpu: 0.0.40
codegen_flags: <defaults>
</compile_context>

<pallas_src>
import jax
import jax.numpy as jnp
from jax.experimental import pallas as pl
from jax.experimental.pallas import tpu as pltpu

EPS = 1e-5


def _conv_relu_bn(h, w_flat, bias, gamma, beta, pos, lvalid_in, batch):
    """Conv1d(VALID, stride=1) + ReLU + BatchNorm1d(train), flattened 2D layout.

    h      : (N, Cin) f32, N = batch * STRIDE; valid rows are pos < lvalid_in
    w_flat : (K*Cin, Cout) bf16 im2col weights
    bias/gamma/beta : (1, Cout) f32
    pos    : (N, 1) int32 position-within-batch-block
    returns ((N, Cout) f32, lvalid_out)
    """
    n, cin = h.shape
    kc, cout = w_flat.shape
    k = kc // cin
    lvalid_out = lvalid_in - k + 1

    # im2col via XLU sublane rolls: slab dk row i == h row (i+dk) mod n.
    # Wrap-around / cross-batch rows only reach output positions >= lvalid_out,
    # which are excluded from the BN statistics and the final max-pool.
    slabs = [h.astype(jnp.bfloat16)]
    for dk in range(1, k):
        slabs.append(pltpu.roll(h, shift=(n - dk) % n, axis=0).astype(jnp.bfloat16))
    xs = jnp.concatenate(slabs, axis=1)                       # (N, K*Cin) bf16

    acc = jax.lax.dot_general(                                # one long-K MXU matmul
        xs, w_flat, dimension_numbers=(((1,), (0,)), ((), ())),
        preferred_element_type=jnp.float32)                   # (N, Cout) f32

    acc = jnp.maximum(acc + bias, 0.0)                        # conv bias + ReLU (f32 VPU)

    # BatchNorm1d training-mode batch stats over the batch*lvalid_out valid
    # positions; two-pass centered variance; affine folded into a single FMA.
    maskf = (pos < lvalid_out).astype(jnp.float32)            # (N, 1)
    inv_cnt = 1.0 / float(batch * lvalid_out)
    mean = jnp.sum(acc * maskf, axis=0, keepdims=True) * inv_cnt
    d = (acc - mean) * maskf
    var = jnp.sum(d * d, axis=0, keepdims=True) * inv_cnt
    scale = gamma * jax.lax.rsqrt(var + EPS)
    shift = beta - mean * scale
    return acc * scale + shift, lvalid_out


def prepare_params(p):
    """One-time layout transforms hoisted out of the per-call path."""
    C = p["embed"].shape[1]

    def flat_w(w):   # PyTorch (Cout, Cin, K) -> im2col (K*Cin, Cout), bf16
        Cout, Cin, K = w.shape
        return (jnp.transpose(w, (2, 1, 0)).reshape(K * Cin, Cout)
                .astype(jnp.bfloat16))

    def vec(v):
        return jnp.asarray(v, jnp.float32).reshape(1, C)

    kp = {"embed": jnp.asarray(p["embed"], jnp.bfloat16)}     # bf16 MXU operand
    for i in (1, 2, 3):
        kp[f"w{i}"] = flat_w(p[f"w{i}"])
        kp[f"b{i}"] = vec(p[f"b{i}"])
        kp[f"g{i}"] = vec(p[f"g{i}"])
        kp[f"be{i}"] = vec(p[f"be{i}"])
    return kp


@jax.jit
def target_representation(tokens, kp):
    """tokens: (B, L) int32 in [0, vocab). kp: prepare_params(...). -> (B, 128) f32."""
    B, L = tokens.shape
    V, C = kp["embed"].shape
    K1 = kp["w1"].shape[0] // C
    K2 = kp["w2"].shape[0] // C
    K3 = kp["w3"].shape[0] // C

    stride = ((L + 7) // 8) * 8            # per-batch row block, sublane aligned
    n = B * stride
    lvalid_final = L - (K1 - 1) - (K2 - 1) - (K3 - 1)
    assert lvalid_final >= 1, "sequence too short for the conv stack"

    # Padded token ids (padding_idx=0) + per-row position index; padded rows
    # are masked out of BN stats and the pool inside the kernel.
    tok = jnp.pad(tokens.astype(jnp.int32),
                  ((0, 0), (0, stride - L))).reshape(n, 1)
    pos = jnp.broadcast_to(jnp.arange(stride, dtype=jnp.int32)[None, :],
                           (B, stride)).reshape(n, 1)

    def kernel(pos_ref, tok_ref, emb_ref,
               w1_ref, b1_ref, g1_ref, be1_ref,
               w2_hbm, b2_ref, g2_ref, be2_ref,
               w3_hbm, b3_ref, g3_ref, be3_ref,
               o_ref, w2_buf, w3_buf, sem):
        # Start conv2/conv3 weight DMA now; it overlaps the embedding matmul
        # and the whole first conv block.
        cp2 = pltpu.make_async_copy(w2_hbm, w2_buf, sem.at[0])
        cp3 = pltpu.make_async_copy(w3_hbm, w3_buf, sem.at[1])
        cp2.start()
        cp3.start()

        pos_col = pos_ref[...]                                  # (N, 1) int32
        tok_col = tok_ref[...]                                  # (N, 1) int32

        # Fused embedding lookup: exact one-hot bf16 MXU matmul (0/1 products
        # are exact; f32 accumulation). Out-of-range ids give a zero row.
        onehot = (jax.lax.broadcasted_iota(jnp.int32, (n, V), 1) == tok_col
                  ).astype(jnp.bfloat16)
        x = jax.lax.dot_general(onehot, emb_ref[...],
                                dimension_numbers=(((1,), (0,)), ((), ())),
                                preferred_element_type=jnp.float32)   # (N, C) f32

        h, lv = _conv_relu_bn(x, w1_ref[...], b1_ref[...], g1_ref[...],
                              be1_ref[...], pos_col, L, B)            # k=3
        cp2.wait()
        h, lv = _conv_relu_bn(h, w2_buf[...], b2_ref[...], g2_ref[...],
                              be2_ref[...], pos_col, lv, B)           # k=6
        cp3.wait()
        h, lv = _conv_relu_bn(h, w3_buf[...], b3_ref[...], g3_ref[...],
                              be3_ref[...], pos_col, lv, B)           # k=9

        # AdaptiveMaxPool1d(1) over the remaining valid positions + squeeze.
        hm = jnp.where(pos_col < lv, h, -jnp.inf)
        o_ref[...] = jnp.max(hm.reshape(B, stride, C), axis=1)

    vmem = pl.BlockSpec(memory_space=pltpu.MemorySpace.VMEM)
    hbm = pl.BlockSpec(memory_space=pl.ANY)
    in_specs = [vmem, vmem, vmem,
                vmem, vmem, vmem, vmem,
                hbm, vmem, vmem, vmem,
                hbm, vmem, vmem, vmem]
    args = (pos, tok, kp["embed"],
            kp["w1"], kp["b1"], kp["g1"], kp["be1"],
            kp["w2"], kp["b2"], kp["g2"], kp["be2"],
            kp["w3"], kp["b3"], kp["g3"], kp["be3"])

    # Advisory cost estimate so XLA schedules sensibly around this tiny call.
    flops = 2 * n * V * C + 2 * n * (K1 + K2 + K3) * C * C
    bytes_accessed = sum(int(a.size) * a.dtype.itemsize for a in args) + B * C * 4

    return pl.pallas_call(
        kernel,
        out_shape=jax.ShapeDtypeStruct((B, C), jnp.float32),
        in_specs=in_specs,
        out_specs=vmem,
        scratch_shapes=[pltpu.VMEM((K2 * C, C), jnp.bfloat16),
                        pltpu.VMEM((K3 * C, C), jnp.bfloat16),
                        pltpu.SemaphoreType.DMA((2,))],
        cost_estimate=pl.CostEstimate(flops=int(flops), transcendentals=3 * C,
                                      bytes_accessed=int(bytes_accessed)),
    )(*args)


def reference(tokens, p):
    """Pure-f32 JAX mirror of the PyTorch forward (NCW layout)."""
    x = jnp.take(p["embed"], tokens, axis=0).astype(jnp.float32)   # (B, L, C)
    v = jnp.transpose(x, (0, 2, 1))                                # (B, C, L)

    def block(v, w, b, g, be):
        out = jax.lax.conv_general_dilated(
            v, w, window_strides=(1,), padding="VALID",
            dimension_numbers=("NCH", "OIH", "NCH"))
        out = out + b[None, :, None]
        out = jnp.maximum(out, 0.0)
        mean = jnp.mean(out, axis=(0, 2), keepdims=True)
        var = jnp.mean((out - mean) ** 2, axis=(0, 2), keepdims=True)
        out = (out - mean) / jnp.sqrt(var + EPS)
        return out * g[None, :, None] + be[None, :, None]

    v = block(v, p["w1"], p["b1"], p["g1"], p["be1"])
    v = block(v, p["w2"], p["b2"], p["g2"], p["be2"])
    v = block(v, p["w3"], p["b3"], p["g3"], p["be3"])
    return jnp.max(v, axis=-1)


if __name__ == "__main__":
    B, L, V, C = 2, 32, 26, 128    # vocab_size = 25 + 1, embedding_num = 128
    key = jax.random.PRNGKey(0)
    ks = jax.random.split(key, 14)

    tokens = jax.random.randint(ks[0], (B, L), 0, V, dtype=jnp.int32)

    embed = jax.random.normal(ks[1], (V, C), jnp.float32)
    embed = embed.at[0].set(0.0)   # padding_idx=0 row is zero-initialized

    def conv_w(k, K):
        return jax.random.normal(k, (C, C, K), jnp.float32) / jnp.sqrt(C * K)

    params = {
        "embed": embed,
        "w1": conv_w(ks[2], 3), "b1": 0.1 * jax.random.normal(ks[3], (C,), jnp.float32),
        "w2": conv_w(ks[4], 6), "b2": 0.1 * jax.random.normal(ks[5], (C,), jnp.float32),
        "w3": conv_w(ks[6], 9), "b3": 0.1 * jax.random.normal(ks[7], (C,), jnp.float32),
        "g1": 1.0 + 0.1 * jax.random.normal(ks[8], (C,), jnp.float32),
        "be1": 0.1 * jax.random.normal(ks[9], (C,), jnp.float32),
        "g2": 1.0 + 0.1 * jax.random.normal(ks[10], (C,), jnp.float32),
        "be2": 0.1 * jax.random.normal(ks[11], (C,), jnp.float32),
        "g3": 1.0 + 0.1 * jax.random.normal(ks[12], (C,), jnp.float32),
        "be3": 0.1 * jax.random.normal(ks[13], (C,), jnp.float32),
    }

    kp = prepare_params(params)                       # one-time layout / bf16 prep
    out = jax.block_until_ready(target_representation(tokens, kp))
    assert out.shape == (B, C), out.shape
    assert bool(jnp.all(jnp.isfinite(out))), "non-finite output"

    # Correctness vs the pure-f32 PyTorch-equivalent reference. The kernel uses
    # bf16 MXU operands with f32 accumulation; compounded over three
    # conv+BatchNorm layers this gives ~1e-2 RMS drift (structural bugs would
    # produce O(1) errors), hence the tolerances below.
    ref = jax.block_until_ready(reference(tokens, params))
    abs_err = jnp.abs(out - ref)
    max_err = float(jnp.max(abs_err))
    rel_l2 = float(jnp.linalg.norm(out - ref) / jnp.linalg.norm(ref))
    assert rel_l2 < 2.5e-2, f"relative L2 error too large: {rel_l2}"
    assert max_err < 1.2e-1, f"max abs error too large: {max_err}"

    print("KERNEL_OK")
</pallas_src>

<mosaic_0001>
module attributes {stable_mosaic.version = 11 : i64} {
  func.func @kernel(%arg0: memref<64x1xi32, #tpu.memory_space<vmem>>, %arg1: memref<64x1xi32, #tpu.memory_space<vmem>>, %arg2: memref<26x128xbf16, #tpu.memory_space<vmem>>, %arg3: memref<384x128xbf16, #tpu.memory_space<vmem>>, %arg4: memref<1x128xf32, #tpu.memory_space<vmem>>, %arg5: memref<1x128xf32, #tpu.memory_space<vmem>>, %arg6: memref<1x128xf32, #tpu.memory_space<vmem>>, %arg7: memref<768x128xbf16, #tpu.memory_space<any>>, %arg8: memref<1x128xf32, #tpu.memory_space<vmem>>, %arg9: memref<1x128xf32, #tpu.memory_space<vmem>>, %arg10: memref<1x128xf32, #tpu.memory_space<vmem>>, %arg11: memref<1152x128xbf16, #tpu.memory_space<any>>, %arg12: memref<1x128xf32, #tpu.memory_space<vmem>>, %arg13: memref<1x128xf32, #tpu.memory_space<vmem>>, %arg14: memref<1x128xf32, #tpu.memory_space<vmem>>, %arg15: memref<2x128xf32, #tpu.memory_space<vmem>>, %arg16: memref<768x128xbf16, #tpu.memory_space<vmem>>, %arg17: memref<1152x128xbf16, #tpu.memory_space<vmem>>, %arg18: memref<2x!tpu.dma_semaphore, #tpu.memory_space<semaphore_mem>>) attributes {dimension_semantics = [], scalar_prefetch = 0 : i64, scratch_operands = 3 : i64, tpu.core_type = #tpu.core_type<tc>} {
    %c0_i32 = arith.constant 0 : i32
    %0 = tpu.memref_slice %arg18[%c0_i32] : memref<2x!tpu.dma_semaphore, #tpu.memory_space<semaphore_mem>> -> memref<1x!tpu.dma_semaphore, #tpu.memory_space<semaphore_mem>>
    %1 = tpu.memref_squeeze %0 : memref<1x!tpu.dma_semaphore, #tpu.memory_space<semaphore_mem>> -> memref<!tpu.dma_semaphore, #tpu.memory_space<semaphore_mem>>
    tpu.enqueue_dma source(%arg7 : memref<768x128xbf16, #tpu.memory_space<any>>) target(%arg16 : memref<768x128xbf16, #tpu.memory_space<vmem>>) target_semaphore(%1 : memref<!tpu.dma_semaphore, #tpu.memory_space<semaphore_mem>>)
    %c1_i32 = arith.constant 1 : i32
    %2 = tpu.memref_slice %arg18[%c1_i32] : memref<2x!tpu.dma_semaphore, #tpu.memory_space<semaphore_mem>> -> memref<1x!tpu.dma_semaphore, #tpu.memory_space<semaphore_mem>>
    %3 = tpu.memref_squeeze %2 : memref<1x!tpu.dma_semaphore, #tpu.memory_space<semaphore_mem>> -> memref<!tpu.dma_semaphore, #tpu.memory_space<semaphore_mem>>
    tpu.enqueue_dma source(%arg11 : memref<1152x128xbf16, #tpu.memory_space<any>>) target(%arg17 : memref<1152x128xbf16, #tpu.memory_space<vmem>>) target_semaphore(%3 : memref<!tpu.dma_semaphore, #tpu.memory_space<semaphore_mem>>)
    %c0 = arith.constant 0 : index
    %c0_0 = arith.constant 0 : index
    %4 = vector.load %arg0[%c0, %c0_0] : memref<64x1xi32, #tpu.memory_space<vmem>>, vector<64x1xi32>
    %c0_1 = arith.constant 0 : index
    %c0_2 = arith.constant 0 : index
    %5 = vector.load %arg1[%c0_1, %c0_2] : memref<64x1xi32, #tpu.memory_space<vmem>>, vector<64x1xi32>
    %6 = tpu.iota {dimensions = array<i32: 1>} : vector<64x26xi32>
    %7 = vector.broadcast %5 : vector<64x1xi32> to vector<64x26xi32>
    %8 = arith.cmpi eq, %6, %7 : vector<64x26xi32>
    %9 = arith.extui %8 : vector<64x26xi1> to vector<64x26xi32>
    %10 = arith.sitofp %9 : vector<64x26xi32> to vector<64x26xf32>
    %11 = arith.truncf %10 : vector<64x26xf32> to vector<64x26xbf16>
    %c0_3 = arith.constant 0 : index
    %c0_4 = arith.constant 0 : index
    %12 = vector.load %arg2[%c0_3, %c0_4] : memref<26x128xbf16, #tpu.memory_space<vmem>>, vector<26x128xbf16>
    %cst = arith.constant dense<0.000000e+00> : vector<64x128xf32>
    %13 = tpu.matmul %11, %12, %cst {dimension_numbers = #tpu.dot_dimension_numbers<[1], [0], [0], [1], [0, 0, 1, 1], [], []>} : vector<64x26xbf16>, vector<26x128xbf16>, vector<64x128xf32> -> vector<64x128xf32>
    %c0_5 = arith.constant 0 : index
    %c0_6 = arith.constant 0 : index
    %14 = vector.load %arg3[%c0_5, %c0_6] : memref<384x128xbf16, #tpu.memory_space<vmem>>, vector<384x128xbf16>
    %c0_7 = arith.constant 0 : index
    %c0_8 = arith.constant 0 : index
    %15 = vector.load %arg4[%c0_7, %c0_8] : memref<1x128xf32, #tpu.memory_space<vmem>>, vector<1x128xf32>
    %c0_9 = arith.constant 0 : index
    %c0_10 = arith.constant 0 : index
    %16 = vector.load %arg5[%c0_9, %c0_10] : memref<1x128xf32, #tpu.memory_space<vmem>>, vector<1x128xf32>
    %c0_11 = arith.constant 0 : index
    %c0_12 = arith.constant 0 : index
    %17 = vector.load %arg6[%c0_11, %c0_12] : memref<1x128xf32, #tpu.memory_space<vmem>>, vector<1x128xf32>
    %18 = arith.truncf %13 : vector<64x128xf32> to vector<64x128xbf16>
    %c63_i32 = arith.constant 63 : i32
    %19 = tpu.dynamic_rotate %13 by %c63_i32 dim 0 : vector<64x128xf32>, i32 -> vector<64x128xf32>
    %20 = arith.truncf %19 : vector<64x128xf32> to vector<64x128xbf16>
    %c62_i32 = arith.constant 62 : i32
    %21 = tpu.dynamic_rotate %13 by %c62_i32 dim 0 : vector<64x128xf32>, i32 -> vector<64x128xf32>
    %22 = arith.truncf %21 : vector<64x128xf32> to vector<64x128xbf16>
    %23 = tpu.concatenate %18, %20, %22 in 1 : vector<64x128xbf16>, vector<64x128xbf16>, vector<64x128xbf16> -> vector<64x384xbf16>
    %cst_13 = arith.constant dense<0.000000e+00> : vector<64x128xf32>
    %24 = tpu.matmul %23, %14, %cst_13 {dimension_numbers = #tpu.dot_dimension_numbers<[1], [0], [0], [1], [0, 0, 1, 1], [], []>} : vector<64x384xbf16>, vector<384x128xbf16>, vector<64x128xf32> -> vector<64x128xf32>
    %25 = vector.broadcast %15 : vector<1x128xf32> to vector<64x128xf32>
    %26 = arith.addf %24, %25 : vector<64x128xf32>
    %cst_14 = arith.constant 0.000000e+00 : f32
    %27 = vector.broadcast %cst_14 : f32 to vector<64x128xf32>
    %28 = arith.maximumf %26, %27 : vector<64x128xf32>
    %c30_i32 = arith.constant 30 : i32
    %29 = vector.broadcast %c30_i32 : i32 to vector<64x1xi32>
    %30 = arith.cmpi slt, %4, %29 : vector<64x1xi32>
    %31 = arith.extui %30 : vector<64x1xi1> to vector<64x1xi32>
    %32 = arith.sitofp %31 : vector<64x1xi32> to vector<64x1xf32>
    %33 = vector.broadcast %32 : vector<64x1xf32> to vector<64x128xf32>
    %34 = arith.mulf %28, %33 : vector<64x128xf32>
    %cst_15 = arith.constant dense<0.000000e+00> : vector<128xf32>
    %35 = vector.multi_reduction <add>, %34, %cst_15 [0] : vector<64x128xf32> to vector<128xf32>
    %36 = vector.shape_cast %35 : vector<128xf32> to vector<1x128xf32>
    %cst_16 = arith.constant 0.0166666675 : f32
    %37 = vector.broadcast %cst_16 : f32 to vector<1x128xf32>
    %38 = arith.mulf %36, %37 : vector<1x128xf32>
    %39 = vector.broadcast %38 : vector<1x128xf32> to vector<64x128xf32>
    %40 = arith.subf %28, %39 : vector<64x128xf32>
    %41 = vector.broadcast %32 : vector<64x1xf32> to vector<64x128xf32>
    %42 = arith.mulf %40, %41 : vector<64x128xf32>
    %43 = arith.mulf %42, %42 : vector<64x128xf32>
    %cst_17 = arith.constant dense<0.000000e+00> : vector<128xf32>
    %44 = vector.multi_reduction <add>, %43, %cst_17 [0] : vector<64x128xf32> to vector<128xf32>
    %45 = vector.shape_cast %44 : vector<128xf32> to vector<1x128xf32>
    %cst_18 = arith.constant 0.0166666675 : f32
    %46 = vector.broadcast %cst_18 : f32 to vector<1x128xf32>
    %47 = arith.mulf %45, %46 : vector<1x128xf32>
    %cst_19 = arith.constant 9.99999974E-6 : f32
    %48 = vector.broadcast %cst_19 : f32 to vector<1x128xf32>
    %49 = arith.addf %47, %48 : vector<1x128xf32>
    %50 = math.rsqrt %49 : vector<1x128xf32>
    %51 = arith.mulf %16, %50 : vector<1x128xf32>
    %52 = arith.mulf %38, %51 : vector<1x128xf32>
    %53 = arith.subf %17, %52 : vector<1x128xf32>
    %54 = vector.broadcast %51 : vector<1x128xf32> to vector<64x128xf32>
    %55 = arith.mulf %28, %54 : vector<64x128xf32>
    %56 = vector.broadcast %53 : vector<1x128xf32> to vector<64x128xf32>
    %57 = arith.addf %55, %56 : vector<64x128xf32>
    %c0_i32_20 = arith.constant 0 : i32
    %58 = tpu.memref_slice %arg18[%c0_i32_20] : memref<2x!tpu.dma_semaphore, #tpu.memory_space<semaphore_mem>> -> memref<1x!tpu.dma_semaphore, #tpu.memory_space<semaphore_mem>>
    %59 = tpu.memref_squeeze %58 : memref<1x!tpu.dma_semaphore, #tpu.memory_space<semaphore_mem>> -> memref<!tpu.dma_semaphore, #tpu.memory_space<semaphore_mem>>
    tpu.wait_dma2 semaphore(%59 : memref<!tpu.dma_semaphore, #tpu.memory_space<semaphore_mem>>) src(%arg7 : memref<768x128xbf16, #tpu.memory_space<any>>) dst(%arg16 : memref<768x128xbf16, #tpu.memory_space<vmem>>)
    %c0_21 = arith.constant 0 : index
    %c0_22 = arith.constant 0 : index
    %60 = vector.load %arg16[%c0_21, %c0_22] : memref<768x128xbf16, #tpu.memory_space<vmem>>, vector<768x128xbf16>
    %c0_23 = arith.constant 0 : index
    %c0_24 = arith.constant 0 : index
    %61 = vector.load %arg8[%c0_23, %c0_24] : memref<1x128xf32, #tpu.memory_space<vmem>>, vector<1x128xf32>
    %c0_25 = arith.constant 0 : index
    %c0_26 = arith.constant 0 : index
    %62 = vector.load %arg9[%c0_25, %c0_26] : memref<1x128xf32, #tpu.memory_space<vmem>>, vector<1x128xf32>
    %c0_27 = arith.constant 0 : index
    %c0_28 = arith.constant 0 : index
    %63 = vector.load %arg10[%c0_27, %c0_28] : memref<1x128xf32, #tpu.memory_space<vmem>>, vector<1x128xf32>
    %64 = arith.truncf %57 : vector<64x128xf32> to vector<64x128xbf16>
    %c63_i32_29 = arith.constant 63 : i32
    %65 = tpu.dynamic_rotate %57 by %c63_i32_29 dim 0 : vector<64x128xf32>, i32 -> vector<64x128xf32>
    %66 = arith.truncf %65 : vector<64x128xf32> to vector<64x128xbf16>
    %c62_i32_30 = arith.constant 62 : i32
    %67 = tpu.dynamic_rotate %57 by %c62_i32_30 dim 0 : vector<64x128xf32>, i32 -> vector<64x128xf32>
    %68 = arith.truncf %67 : vector<64x128xf32> to vector<64x128xbf16>
    %c61_i32 = arith.constant 61 : i32
    %69 = tpu.dynamic_rotate %57 by %c61_i32 dim 0 : vector<64x128xf32>, i32 -> vector<64x128xf32>
    %70 = arith.truncf %69 : vector<64x128xf32> to vector<64x128xbf16>
    %c60_i32 = arith.constant 60 : i32
    %71 = tpu.dynamic_rotate %57 by %c60_i32 dim 0 : vector<64x128xf32>, i32 -> vector<64x128xf32>
    %72 = arith.truncf %71 : vector<64x128xf32> to vector<64x128xbf16>
    %c59_i32 = arith.constant 59 : i32
    %73 = tpu.dynamic_rotate %57 by %c59_i32 dim 0 : vector<64x128xf32>, i32 -> vector<64x128xf32>
    %74 = arith.truncf %73 : vector<64x128xf32> to vector<64x128xbf16>
    %75 = tpu.concatenate %64, %66, %68, %70, %72, %74 in 1 : vector<64x128xbf16>, vector<64x128xbf16>, vector<64x128xbf16>, vector<64x128xbf16>, vector<64x128xbf16>, vector<64x128xbf16> -> vector<64x768xbf16>
    %cst_31 = arith.constant dense<0.000000e+00> : vector<64x128xf32>
    %76 = tpu.matmul %75, %60, %cst_31 {dimension_numbers = #tpu.dot_dimension_numbers<[1], [0], [0], [1], [0, 0, 1, 1], [], []>} : vector<64x768xbf16>, vector<768x128xbf16>, vector<64x128xf32> -> vector<64x128xf32>
    %77 = vector.broadcast %61 : vector<1x128xf32> to vector<64x128xf32>
    %78 = arith.addf %76, %77 : vector<64x128xf32>
    %cst_32 = arith.constant 0.000000e+00 : f32
    %79 = vector.broadcast %cst_32 : f32 to vector<64x128xf32>
    %80 = arith.maximumf %78, %79 : vector<64x128xf32>
    %c25_i32 = arith.constant 25 : i32
    %81 = vector.broadcast %c25_i32 : i32 to vector<64x1xi32>
    %82 = arith.cmpi slt, %4, %81 : vector<64x1xi32>
    %83 = arith.extui %82 : vector<64x1xi1> to vector<64x1xi32>
    %84 = arith.sitofp %83 : vector<64x1xi32> to vector<64x1xf32>
    %85 = vector.broadcast %84 : vector<64x1xf32> to vector<64x128xf32>
    %86 = arith.mulf %80, %85 : vector<64x128xf32>
    %cst_33 = arith.constant dense<0.000000e+00> : vector<128xf32>
    %87 = vector.multi_reduction <add>, %86, %cst_33 [0] : vector<64x128xf32> to vector<128xf32>
    %88 = vector.shape_cast %87 : vector<128xf32> to vector<1x128xf32>
    %cst_34 = arith.constant 2.000000e-02 : f32
    %89 = vector.broadcast %cst_34 : f32 to vector<1x128xf32>
    %90 = arith.mulf %88, %89 : vector<1x128xf32>
    %91 = vector.broadcast %90 : vector<1x128xf32> to vector<64x128xf32>
    %92 = arith.subf %80, %91 : vector<64x128xf32>
    %93 = vector.broadcast %84 : vector<64x1xf32> to vector<64x128xf32>
    %94 = arith.mulf %92, %93 : vector<64x128xf32>
    %95 = arith.mulf %94, %94 : vector<64x128xf32>
    %cst_35 = arith.constant dense<0.000000e+00> : vector<128xf32>
    %96 = vector.multi_reduction <add>, %95, %cst_35 [0] : vector<64x128xf32> to vector<128xf32>
    %97 = vector.shape_cast %96 : vector<128xf32> to vector<1x128xf32>
    %cst_36 = arith.constant 2.000000e-02 : f32
    %98 = vector.broadcast %cst_36 : f32 to vector<1x128xf32>
    %99 = arith.mulf %97, %98 : vector<1x128xf32>
    %cst_37 = arith.constant 9.99999974E-6 : f32
    %100 = vector.broadcast %cst_37 : f32 to vector<1x128xf32>
    %101 = arith.addf %99, %100 : vector<1x128xf32>
    %102 = math.rsqrt %101 : vector<1x128xf32>
    %103 = arith.mulf %62, %102 : vector<1x128xf32>
    %104 = arith.mulf %90, %103 : vector<1x128xf32>
    %105 = arith.subf %63, %104 : vector<1x128xf32>
    %106 = vector.broadcast %103 : vector<1x128xf32> to vector<64x128xf32>
    %107 = arith.mulf %80, %106 : vector<64x128xf32>
    %108 = vector.broadcast %105 : vector<1x128xf32> to vector<64x128xf32>
    %109 = arith.addf %107, %108 : vector<64x128xf32>
    %c1_i32_38 = arith.constant 1 : i32
    %110 = tpu.memref_slice %arg18[%c1_i32_38] : memref<2x!tpu.dma_semaphore, #tpu.memory_space<semaphore_mem>> -> memref<1x!tpu.dma_semaphore, #tpu.memory_space<semaphore_mem>>
    %111 = tpu.memref_squeeze %110 : memref<1x!tpu.dma_semaphore, #tpu.memory_space<semaphore_mem>> -> memref<!tpu.dma_semaphore, #tpu.memory_space<semaphore_mem>>
    tpu.wait_dma2 semaphore(%111 : memref<!tpu.dma_semaphore, #tpu.memory_space<semaphore_mem>>) src(%arg11 : memref<1152x128xbf16, #tpu.memory_space<any>>) dst(%arg17 : memref<1152x128xbf16, #tpu.memory_space<vmem>>)
    %c0_39 = arith.constant 0 : index
    %c0_40 = arith.constant 0 : index
    %112 = vector.load %arg17[%c0_39, %c0_40] : memref<1152x128xbf16, #tpu.memory_space<vmem>>, vector<1152x128xbf16>
    %c0_41 = arith.constant 0 : index
    %c0_42 = arith.constant 0 : index
    %113 = vector.load %arg12[%c0_41, %c0_42] : memref<1x128xf32, #tpu.memory_space<vmem>>, vector<1x128xf32>
    %c0_43 = arith.constant 0 : index
    %c0_44 = arith.constant 0 : index
    %114 = vector.load %arg13[%c0_43, %c0_44] : memref<1x128xf32, #tpu.memory_space<vmem>>, vector<1x128xf32>
    %c0_45 = arith.constant 0 : index
    %c0_46 = arith.constant 0 : index
    %115 = vector.load %arg14[%c0_45, %c0_46] : memref<1x128xf32, #tpu.memory_space<vmem>>, vector<1x128xf32>
    %116 = arith.truncf %109 : vector<64x128xf32> to vector<64x128xbf16>
    %c63_i32_47 = arith.constant 63 : i32
    %117 = tpu.dynamic_rotate %109 by %c63_i32_47 dim 0 : vector<64x128xf32>, i32 -> vector<64x128xf32>
    %118 = arith.truncf %117 : vector<64x128xf32> to vector<64x128xbf16>
    %c62_i32_48 = arith.constant 62 : i32
    %119 = tpu.dynamic_rotate %109 by %c62_i32_48 dim 0 : vector<64x128xf32>, i32 -> vector<64x128xf32>
    %120 = arith.truncf %119 : vector<64x128xf32> to vector<64x128xbf16>
    %c61_i32_49 = arith.constant 61 : i32
    %121 = tpu.dynamic_rotate %109 by %c61_i32_49 dim 0 : vector<64x128xf32>, i32 -> vector<64x128xf32>
    %122 = arith.truncf %121 : vector<64x128xf32> to vector<64x128xbf16>
    %c60_i32_50 = arith.constant 60 : i32
    %123 = tpu.dynamic_rotate %109 by %c60_i32_50 dim 0 : vector<64x128xf32>, i32 -> vector<64x128xf32>
    %124 = arith.truncf %123 : vector<64x128xf32> to vector<64x128xbf16>
    %c59_i32_51 = arith.constant 59 : i32
    %125 = tpu.dynamic_rotate %109 by %c59_i32_51 dim 0 : vector<64x128xf32>, i32 -> vector<64x128xf32>
    %126 = arith.truncf %125 : vector<64x128xf32> to vector<64x128xbf16>
    %c58_i32 = arith.constant 58 : i32
    %127 = tpu.dynamic_rotate %109 by %c58_i32 dim 0 : vector<64x128xf32>, i32 -> vector<64x128xf32>
    %128 = arith.truncf %127 : vector<64x128xf32> to vector<64x128xbf16>
    %c57_i32 = arith.constant 57 : i32
    %129 = tpu.dynamic_rotate %109 by %c57_i32 dim 0 : vector<64x128xf32>, i32 -> vector<64x128xf32>
    %130 = arith.truncf %129 : vector<64x128xf32> to vector<64x128xbf16>
    %c56_i32 = arith.constant 56 : i32
    %131 = tpu.dynamic_rotate %109 by %c56_i32 dim 0 : vector<64x128xf32>, i32 -> vector<64x128xf32>
    %132 = arith.truncf %131 : vector<64x128xf32> to vector<64x128xbf16>
    %133 = tpu.concatenate %116, %118, %120, %122, %124, %126, %128, %130, %132 in 1 : vector<64x128xbf16>, vector<64x128xbf16>, vector<64x128xbf16>, vector<64x128xbf16>, vector<64x128xbf16>, vector<64x128xbf16>, vector<64x128xbf16>, vector<64x128xbf16>, vector<64x128xbf16> -> vector<64x1152xbf16>
    %cst_52 = arith.constant dense<0.000000e+00> : vector<64x128xf32>
    %134 = tpu.matmul %133, %112, %cst_52 {dimension_numbers = #tpu.dot_dimension_numbers<[1], [0], [0], [1], [0, 0, 1, 1], [], []>} : vector<64x1152xbf16>, vector<1152x128xbf16>, vector<64x128xf32> -> vector<64x128xf32>
    %135 = vector.broadcast %113 : vector<1x128xf32> to vector<64x128xf32>
    %136 = arith.addf %134, %135 : vector<64x128xf32>
    %cst_53 = arith.constant 0.000000e+00 : f32
    %137 = vector.broadcast %cst_53 : f32 to vector<64x128xf32>
    %138 = arith.maximumf %136, %137 : vector<64x128xf32>
    %c17_i32 = arith.constant 17 : i32
    %139 = vector.broadcast %c17_i32 : i32 to vector<64x1xi32>
    %140 = arith.cmpi slt, %4, %139 : vector<64x1xi32>
    %141 = arith.extui %140 : vector<64x1xi1> to vector<64x1xi32>
    %142 = arith.sitofp %141 : vector<64x1xi32> to vector<64x1xf32>
    %143 = vector.broadcast %142 : vector<64x1xf32> to vector<64x128xf32>
    %144 = arith.mulf %138, %143 : vector<64x128xf32>
    %cst_54 = arith.constant dense<0.000000e+00> : vector<128xf32>
    %145 = vector.multi_reduction <add>, %144, %cst_54 [0] : vector<64x128xf32> to vector<128xf32>
    %146 = vector.shape_cast %145 : vector<128xf32> to vector<1x128xf32>
    %cst_55 = arith.constant 0.0294117648 : f32
    %147 = vector.broadcast %cst_55 : f32 to vector<1x128xf32>
    %148 = arith.mulf %146, %147 : vector<1x128xf32>
    %149 = vector.broadcast %148 : vector<1x128xf32> to vector<64x128xf32>
    %150 = arith.subf %138, %149 : vector<64x128xf32>
    %151 = vector.broadcast %142 : vector<64x1xf32> to vector<64x128xf32>
    %152 = arith.mulf %150, %151 : vector<64x128xf32>
    %153 = arith.mulf %152, %152 : vector<64x128xf32>
    %cst_56 = arith.constant dense<0.000000e+00> : vector<128xf32>
    %154 = vector.multi_reduction <add>, %153, %cst_56 [0] : vector<64x128xf32> to vector<128xf32>
    %155 = vector.shape_cast %154 : vector<128xf32> to vector<1x128xf32>
    %cst_57 = arith.constant 0.0294117648 : f32
    %156 = vector.broadcast %cst_57 : f32 to vector<1x128xf32>
    %157 = arith.mulf %155, %156 : vector<1x128xf32>
    %cst_58 = arith.constant 9.99999974E-6 : f32
    %158 = vector.broadcast %cst_58 : f32 to vector<1x128xf32>
    %159 = arith.addf %157, %158 : vector<1x128xf32>
    %160 = math.rsqrt %159 : vector<1x128xf32>
    %161 = arith.mulf %114, %160 : vector<1x128xf32>
    %162 = arith.mulf %148, %161 : vector<1x128xf32>
    %163 = arith.subf %115, %162 : vector<1x128xf32>
    %164 = vector.broadcast %161 : vector<1x128xf32> to vector<64x128xf32>
    %165 = arith.mulf %138, %164 : vector<64x128xf32>
    %166 = vector.broadcast %163 : vector<1x128xf32> to vector<64x128xf32>
    %167 = arith.addf %165, %166 : vector<64x128xf32>
    %c17_i32_59 = arith.constant 17 : i32
    %168 = vector.broadcast %c17_i32_59 : i32 to vector<64x1xi32>
    %169 = arith.cmpi slt, %4, %168 : vector<64x1xi32>
    %cst_60 = arith.constant 0xFF800000 : f32
    %170 = vector.shape_cast %169 : vector<64x1xi1> to vector<64x1xi1>
    %171 = vector.broadcast %170 : vector<64x1xi1> to vector<64x128xi1>
    %172 = vector.broadcast %cst_60 : f32 to vector<64x128xf32>
    %173 = arith.select %171, %167, %172 : vector<64x128xi1>, vector<64x128xf32>
    %174 = vector.shape_cast %173 : vector<64x128xf32> to vector<2x32x128xf32>
    %cst_61 = arith.constant dense<0xFF800000> : vector<2x128xf32>
    %175 = vector.multi_reduction <maximumf>, %174, %cst_61 [1] : vector<2x32x128xf32> to vector<2x128xf32>
    %c0_62 = arith.constant 0 : index
    %c0_63 = arith.constant 0 : index
    %176 = vector.load %arg15[%c0_62, %c0_63] : memref<2x128xf32, #tpu.memory_space<vmem>>, vector<2x128xf32>
    tpu.vector_store %arg15[%c0_62, %c0_63], %175 {strides = array<i32>} : memref<2x128xf32, #tpu.memory_space<vmem>>, vector<2x128xf32>,
    return
  }
}

</mosaic_0001>

<llo_original>
// kernel: target_representation.1
$region0: #{target_representation.1}
  #allocation0 [shape = 'u32[]', space=smem, size = 0x4, offset = 0x4, fixed_abs, tag = 'smem constant byte address 0x4 - core index']
  #allocation1 [shape = 'u32[144,128]{1,0:T(1,128)}', space=vmem, size = 0x12000, scoped, tag = 'internal scratch']
  #allocation2 [shape = 'bf16[768,128]{1,0:T(16,128)(2,1)}', space=vmem, size = 0x30000, scoped, tag = 'scratch operand']
  #allocation3 [shape = 'bf16[1152,128]{1,0:T(16,128)(2,1)}', space=vmem, size = 0x48000, scoped, tag = 'scratch operand']
  #allocation4 [shape = 's32[2]{0}', space=sflag, size = 0x8, scoped, tag = 'scratch operand']
  #allocation9 [shape = 's32[]', space=sflag, size = 0x4, offset = 0, fixed_abs, tag = 'sflag constant byte address 0x0 - dummy sync flag']
  #allocation10 [shape = 's32[]', space=sflag, size = 0x4, offset = 0, fixed_abs, tag = 'sflag constant byte address 0x0 - dummy sync flag']
  #allocation11 [shape = 'u32[]', space=smem, size = 0x4, offset = 0x44, fixed_abs, tag = 'smem constant byte address 0x44 - assertion arg 0']
  #allocation12 [shape = 'u32[]', space=smem, size = 0x4, offset = 0x48, fixed_abs, tag = 'smem constant byte address 0x48 - assertion arg 1']
  #allocation13 [shape = 's32[]', space=sflag, size = 0x4, offset = 0, fixed_abs, tag = 'sflag constant byte address 0x0 - dummy sync flag']
  #allocation14 [shape = 's32[]', space=sflag, size = 0x4, offset = 0, fixed_abs, tag = 'sflag constant byte address 0x0 - dummy sync flag']
  %s0 = inlined_call_operand.vmem [shape: s32[64,1], index: 0, kind: input, shape index: {}]
  %s1 = inlined_call_operand.vmem [shape: s32[64,1], index: 1, kind: input, shape index: {}]
  %s2 = inlined_call_operand.vmem [shape: bf16[26,128], index: 2, kind: input, shape index: {}]
  %s3 = inlined_call_operand.hbm [shape: bf16[384,128], index: 3, kind: input, shape index: {}]
  %s4 = inlined_call_operand.vmem [shape: f32[1,128], index: 4, kind: input, shape index: {}]
  %s5 = inlined_call_operand.vmem [shape: f32[1,128], index: 5, kind: input, shape index: {}]
  %s6 = inlined_call_operand.vmem [shape: f32[1,128], index: 6, kind: input, shape index: {}]
  %s7 = inlined_call_operand.hbm [shape: bf16[768,128], index: 7, kind: input, shape index: {}]
  %s8 = inlined_call_operand.vmem [shape: f32[1,128], index: 8, kind: input, shape index: {}]
  %s9 = inlined_call_operand.vmem [shape: f32[1,128], index: 9, kind: input, shape index: {}]
  %s10 = inlined_call_operand.vmem [shape: f32[1,128], index: 10, kind: input, shape index: {}]
  %s11 = inlined_call_operand.hbm [shape: bf16[1152,128], index: 11, kind: input, shape index: {}]
  %s12 = inlined_call_operand.vmem [shape: f32[1,128], index: 12, kind: input, shape index: {}]
  %s13 = inlined_call_operand.vmem [shape: f32[1,128], index: 13, kind: input, shape index: {}]
  %s14 = inlined_call_operand.vmem [shape: f32[1,128], index: 14, kind: input, shape index: {}]
  %s15 = inlined_call_operand.hbm [shape: f32[2,128], index: 15, kind: output, shape index: {}]
  %s16 = sld [smem:[#allocation0]]
  $region74: #{target_representation.1} parent=0
    _
  %s18 = ssub.s32 1, %s16
  %s19 = scalar_select 0, %s18, %s16
  $region1: #{target_representation.1} parent=0
    #allocation5 [shape = 'u8[98304]{0}', space=vmem, size = 0x18000, scoped, tag = 'input window, operand 3, single buffered']
    #allocation6 [shape = 's32[1]{0}', space=sflag, size = 0x4, scoped, tag = 'scoped memory for target_representation.1']
    #allocation7 [shape = 's32[1]{0}', space=sflag, size = 0x4, scoped, tag = 'scoped memory for target_representation.1']
    #allocation8 [shape = 'u8[1024]{0}', space=vmem, size = 0x400, scoped, tag = 'output window, operand 0, single buffered']
    %20 = vsyncpa [#allocation6], 0
    %21 = vsyncpa [#allocation7], 0
    // Predicated region
    $region2: #{target_representation.1} parent=1 // pred_check
      _
    $region3: #{target_representation.1} parent=1 // pred_check_branch
      %23 = sbr.rel (0) target = $region5
    $region4: #{target_representation.1} parent=1 // pred_region
      _
    $region5: #{target_representation.1} parent=1 // pred_fallthru
      _
    // Predicated region
    $region6: #{target_representation.1} parent=1 // pred_check
      _
    $region7: #{target_representation.1} parent=1 // pred_check_branch
      %25 = sbr.rel (0) target = $region9
    $region8: #{target_representation.1} parent=1 // pred_region
      _
    $region9: #{target_representation.1} parent=1 // pred_fallthru
      _
    // Predicated region
    $region10: #{target_representation.1} parent=1 // pred_check
      _
    $region11: #{target_representation.1} parent=1 // pred_check_branch
      %27 = sbr.rel (0) target = $region13
    $region12: #{target_representation.1} parent=1 // pred_region
      _
    $region13: #{target_representation.1} parent=1 // pred_fallthru
      _
    // Predicated region
    $region14: #{target_representation.1} parent=1 // pred_check
      _
    $region15: #{target_representation.1} parent=1 // pred_check_branch
      %29 = sbr.rel (0) target = $region17
    $region16: #{target_representation.1} parent=1 // pred_region
      %s31 = ssub.s32 3072, 3072
      %32 = vsyncadd [#allocation6], %s31
      %s33 = sshll.u32 [#allocation5], 4
      %s34 = int_to_ptr.vmem [resolvable:$true] %s33
      %39 = dma.hbm_to_vmem [thread:$0]  %s3, 3072, %s34, [#allocation6], 64, 64, 4
    $region17: #{target_representation.1} parent=1 // pred_fallthru
      _
    // Predicated region
    $region18: #{target_representation.1} parent=1 // pred_check
      _
    $region19: #{target_representation.1} parent=1 // pred_check_branch
      %41 = sbr.rel (0) target = $region21
    $region20: #{target_representation.1} parent=1 // pred_region
      _
    $region21: #{target_representation.1} parent=1 // pred_fallthru
      _
    // Predicated region
    $region22: #{target_representation.1} parent=1 // pred_check
      _
    $region23: #{target_representation.1} parent=1 // pred_check_branch
      %43 = sbr.rel (0) target = $region25
    $region24: #{target_representation.1} parent=1 // pred_region
      _
    $region25: #{target_representation.1} parent=1 // pred_fallthru
      _
    // Predicated region
    $region26: #{target_representation.1} parent=1 // pred_check
      _
    $region27: #{target_representation.1} parent=1 // pred_check_branch
      %45 = sbr.rel (0) target = $region29
    $region28: #{target_representation.1} parent=1 // pred_region
      _
    $region29: #{target_representation.1} parent=1 // pred_fallthru
      _
    // Predicated region
    $region30: #{target_representation.1} parent=1 // pred_check
      _
    $region31: #{target_representation.1} parent=1 // pred_check_branch
      %47 = sbr.rel (0) target = $region33
    $region32: #{target_representation.1} parent=1 // pred_region
      _
    $region33: #{target_representation.1} parent=1 // pred_fallthru
      _
    // Predicated region
    $region34: #{target_representation.1} parent=1 // pred_check
      _
    $region35: #{target_representation.1} parent=1 // pred_check_branch
      %49 = sbr.rel (0) target = $region37
    $region36: #{target_representation.1} parent=1 // pred_region
      _
    $region37: #{target_representation.1} parent=1 // pred_fallthru
      _
    // Predicated region
    $region38: #{target_representation.1} parent=1 // pred_check
      _
    $region39: #{target_representation.1} parent=1 // pred_check_branch
      %51 = sbr.rel (0) target = $region41
    $region40: #{target_representation.1} parent=1 // pred_region
      _
    $region41: #{target_representation.1} parent=1 // pred_fallthru
      _
    // Predicated region
    $region42: #{target_representation.1} parent=1 // pred_check
      _
    $region43: #{target_representation.1} parent=1 // pred_check_branch
      %53 = sbr.rel (0) target = $region45
    $region44: #{target_representation.1} parent=1 // pred_region
      _
    $region45: #{target_representation.1} parent=1 // pred_fallthru
      _
    // Predicated region
    $region46: #{target_representation.1} parent=1 // pred_check
      _
    $region47: #{target_representation.1} parent=1 // pred_check_branch
      %55 = sbr.rel (0) target = $region49
    $region48: #{target_representation.1} parent=1 // pred_region
      _
    $region49: #{target_representation.1} parent=1 // pred_fallthru
      _
    // Predicated region
    $region50: #{target_representation.1} parent=1 // pred_check
      _
    $region51: #{target_representation.1} parent=1 // pred_check_branch
      %57 = sbr.rel (0) target = $region53
    $region52: #{target_representation.1} parent=1 // pred_region
      _
    $region53: #{target_representation.1} parent=1 // pred_fallthru
      _
    // Predicated region
    $region54: #{target_representation.1} parent=1 // pred_check
      _
    $region55: #{target_representation.1} parent=1 // pred_check_branch
      %59 = sbr.rel (0) target = $region57
    $region56: #{target_representation.1} parent=1 // pred_region
      %60 = dma.done [#allocation6], 3072
    $region57: #{target_representation.1} parent=1 // pred_fallthru
      _
    // Predicated region
    $region58: #{target_representation.1} parent=1 // pred_check
      _
    $region59: #{target_representation.1} parent=1 // pred_check_branch
      %63 = sbr.rel target = $region61
    $region60: #{target_representation.1} parent=1 // pred_region
      %64 = sst [smem:[#allocation11]] [#allocation10]
      %65 = sst [smem:[#allocation12]] [#allocation9]
    $region61: #{target_representation.1} parent=1 // pred_fallthru
      _
    %67 = shalt.err (0)
    %s69 = sshll.u32 [#allocation2], 4
    %s70 = int_to_ptr.vmem [resolvable:$true] %s69
    %72 = dma.hbm_to_vmem [thread:$0]  %s7, 6144, %s70, [#allocation4]
    %s73 = scalar_lea.sflag [#allocation4], 1
    // Predicated region
    $region62: #{target_representation.1} parent=1 // pred_check
      _
    $region63: #{target_representation.1} parent=1 // pred_check_branch
      %75 = sbr.rel target = $region65
    $region64: #{target_representation.1} parent=1 // pred_region
      %76 = sst [smem:[#allocation11]] [#allocation14]
      %77 = sst [smem:[#allocation12]] [#allocation13]
    $region65: #{target_representation.1} parent=1 // pred_fallthru
      _
    %79 = shalt.err (0)
    %s81 = sshll.u32 [#allocation3], 4
    %s82 = int_to_ptr.vmem [resolvable:$true] %s81
    %84 = dma.hbm_to_vmem [thread:$0]  %s11, 9216, %s82, %s73
    %v85 = vld [vmem:[%s0] sm:$0xff]
    %v86 = vld [vmem:[%s0 + $0x8] sm:$0xff]
    %v87 = vld [vmem:[%s0 + $0x10] sm:$0xff]
    %v88 = vld [vmem:[%s0 + $0x18] sm:$0xff]
    %v89 = vld [vmem:[%s0 + $0x20] sm:$0xff]
    %v90 = vld [vmem:[%s0 + $0x28] sm:$0xff]
    %v91 = vld [vmem:[%s0 + $0x30] sm:$0xff]
    %v92 = vld [vmem:[%s0 + $0x38] sm:$0xff]
    %v93 = vld [vmem:[%s1] sm:$0xff]
    %v94 = vld [vmem:[%s1 + $0x8] sm:$0xff]
    %v95 = vld [vmem:[%s1 + $0x10] sm:$0xff]
    %v96 = vld [vmem:[%s1 + $0x18] sm:$0xff]
    %v97 = vld [vmem:[%s1 + $0x20] sm:$0xff]
    %v98 = vld [vmem:[%s1 + $0x28] sm:$0xff]
    %v99 = vld [vmem:[%s1 + $0x30] sm:$0xff]
    %v100 = vld [vmem:[%s1 + $0x38] sm:$0xff]
    %v101 = vlaneseq
    %v102 = vand.u32 %v101, 127
    %103 = vset.pattern.permute.xlu0 0
    %104 = vperm.xlu0 %103, %v93
    %v105 = vpop.permute.xlu0 %104
    %106 = vset.pattern.permute.xlu0 0
    %107 = vperm.xlu0 %106, %v94
    %v108 = vpop.permute.xlu0 %107
    %109 = vset.pattern.permute.xlu0 0
    %110 = vperm.xlu0 %109, %v95
    %v111 = vpop.permute.xlu0 %110
    %112 = vset.pattern.permute.xlu0 0
    %113 = vperm.xlu0 %112, %v96
    %v114 = vpop.permute.xlu0 %113
    %115 = vset.pattern.permute.xlu0 0
    %116 = vperm.xlu0 %115, %v97
    %v117 = vpop.permute.xlu0 %116
    %118 = vset.pattern.permute.xlu0 0
    %119 = vperm.xlu0 %118, %v98
    %v120 = vpop.permute.xlu0 %119
    %121 = vset.pattern.permute.xlu0 0
    %122 = vperm.xlu0 %121, %v99
    %v123 = vpop.permute.xlu0 %122
    %124 = vset.pattern.permute.xlu0 0
    %125 = vperm.xlu0 %124, %v100
    %v126 = vpop.permute.xlu0 %125
    %vm127 = vcmp.eq.s32.totalorder %v102, %v105
    %vm128 = vcmp.eq.s32.totalorder %v102, %v108
    %vm129 = vcmp.eq.s32.totalorder %v102, %v111
    %vm130 = vcmp.eq.s32.totalorder %v102, %v114
    %vm131 = vcmp.eq.s32.totalorder %v102, %v117
    %vm132 = vcmp.eq.s32.totalorder %v102, %v120
    %vm133 = vcmp.eq.s32.totalorder %v102, %v123
    %vm134 = vcmp.eq.s32.totalorder %v102, %v126
    %v135 = vsel %vm127, 1, 0
    %v136 = vsel %vm128, 1, 0
    %v137 = vsel %vm129, 1, 0
    %v138 = vsel %vm130, 1, 0
    %v139 = vsel %vm131, 1, 0
    %v140 = vsel %vm132, 1, 0
    %v141 = vsel %vm133, 1, 0
    %v142 = vsel %vm134, 1, 0
    %v143 = vcvt.s32.f32 %v135
    %v144 = vcvt.s32.f32 %v136
    %v145 = vcvt.s32.f32 %v137
    %v146 = vcvt.s32.f32 %v138
    %v147 = vcvt.s32.f32 %v139
    %v148 = vcvt.s32.f32 %v140
    %v149 = vcvt.s32.f32 %v141
    %v150 = vcvt.s32.f32 %v142
    %v151 = vpack.c.bf16 %v144, %v143
    %v152 = vpack.c.bf16 %v146, %v145
    %v153 = vpack.c.bf16 %v148, %v147
    %v154 = vpack.c.bf16 %v150, %v149
    %v155 = vld [vmem:[%s2] sm:$0xf]
    %v156 = vld [vmem:[%s2 + $0x4] sm:$0xf]
    %v157 = vld [vmem:[%s2 + $0x8] sm:$0xf]
    %v158 = vld [vmem:[%s2 + $0xc] sm:$0x1]
    %v163 = vunpack.c.l.b16 %v155
    %v164 = vunpack.c.l.b16 %v156
    %v165 = vunpack.c.l.b16 %v157
    %v166 = vunpack.c.l.b16 %v158
    %v167 = vpack.c.b16 %v164, %v163
    %v168 = vpack.c.b16 %v166, %v165
    %vm170 = vcmask 211968
    %v172 = vsel %vm170, %v151, 0
    %v175 = vsel %vm170, %v152, 0
    %v178 = vsel %vm170, %v153, 0
    %v181 = vsel %vm170, %v154, 0
    %vm183 = vcmask 1044480
    %v185 = vsel %vm183, %v168, 0
    %187 = vmatprep.subr.bf16.mxu0 0
    %188 = vmatpush1.bf16.msra.mxu0 %v167
    %189 = vmatprep.subr.bf16.mxu0 0
    %190 = vmatpush1.bf16.msra.mxu0 %v185
    %191 = vmatprep.subr.bf16.mxu0 0
    %192 = vmatpush1.bf16.msra.mxu0 0
    %193 = vmatprep.subr.bf16.mxu0 0
    %194 = vmatpush1.bf16.msra.mxu0 0
    %195 = vmatprep.subr.bf16.mxu0 0
    %196 = vmatpush1.bf16.msra.mxu0 0
    %197 = vmatprep.subr.bf16.mxu0 0
    %198 = vmatpush1.bf16.msra.mxu0 0
    %199 = vmatprep.subr.bf16.mxu0 0
    %200 = vmatpush1.bf16.msra.mxu0 0
    %201 = vmatprep.subr.bf16.mxu0 0
    %202 = vmatpush1.bf16.msra.mxu0 0
    %203 = vmatprep.subr.bf16.mxu0 0
    %204 = vmatpush1.bf16.msra.mxu0 0
    %205 = vmatprep.subr.bf16.mxu0 0
    %206 = vmatpush1.bf16.msra.mxu0 0
    %207 = vmatprep.subr.bf16.mxu0 0
    %208 = vmatpush1.bf16.msra.mxu0 0
    %209 = vmatprep.subr.bf16.mxu0 0
    %210 = vmatpush1.bf16.msra.mxu0 0
    %211 = vmatprep.subr.bf16.mxu0 0
    %212 = vmatpush1.bf16.msra.mxu0 0
    %213 = vmatprep.subr.bf16.mxu0 0
    %214 = vmatpush1.bf16.msra.mxu0 0
    %215 = vmatprep.subr.bf16.mxu0 0
    %216 = vmatpush1.bf16.msra.mxu0 0
    %217 = vmatprep.subr.bf16.mxu0 0
    %218 = vmatpush1.bf16.msra.mxu0 0
    %219 = vmatprep.mubr.bf16.mxu0 0
    %220 = vmatmul.mubr.bf16.gmra.mrb[0].mxu0 %v172
    %v221 = vpop.f32.mrb[0].mxu0
    %v222 = vadd.f32 0.0, %v221
    %v223 = vpop.f32.mrb[0].mxu0
    %v224 = vpop.f32.mrb[0].mxu0
    %v225 = vadd.f32 0.0, %v224
    %v226 = vpop.f32.mrb[0].mxu0
    %227 = vmatprep.mubr.bf16.mxu0 0
    %228 = vmatmul.mubr.bf16.gmra.mrb[0].mxu0 %v175
    %v229 = vpop.f32.mrb[0].mxu0
    %v230 = vadd.f32 0.0, %v229
    %v231 = vpop.f32.mrb[0].mxu0
    %v232 = vpop.f32.mrb[0].mxu0
    %v233 = vadd.f32 0.0, %v232
    %v234 = vpop.f32.mrb[0].mxu0
    %235 = vmatprep.mubr.bf16.mxu0 0
    %236 = vmatmul.mubr.bf16.gmra.mrb[0].mxu0 %v178
    %v237 = vpop.f32.mrb[0].mxu0
    %v238 = vadd.f32 0.0, %v237
    %v239 = vpop.f32.mrb[0].mxu0
    %v240 = vpop.f32.mrb[0].mxu0
    %v241 = vadd.f32 0.0, %v240
    %v242 = vpop.f32.mrb[0].mxu0
    %243 = vmatprep.mubr.bf16.mxu0 0
    %244 = vmatmul.mubr.bf16.gmra.mrb[0].mxu0 %v181
    %v245 = vpop.f32.mrb[0].mxu0
    %v246 = vadd.f32 0.0, %v245
    %v247 = vpop.f32.mrb[0].mxu0
    %v248 = vpop.f32.mrb[0].mxu0
    %v249 = vadd.f32 0.0, %v248
    %v250 = vpop.f32.mrb[0].mxu0
    %251 = vdwg.mxu0
    %v252 = vld [vmem:[#allocation5] sm:$0xf]
    %v253 = vld [vmem:[#allocation5 + $0x4] sm:$0xf]
    %v254 = vld [vmem:[#allocation5 + $0x8] sm:$0xf]
    %v255 = vld [vmem:[#allocation5 + $0xc] sm:$0xf]
    %v256 = vld [vmem:[#allocation5 + $0x10] sm:$0xf]
    %v257 = vld [vmem:[#allocation5 + $0x14] sm:$0xf]
    %v258 = vld [vmem:[#allocation5 + $0x18] sm:$0xf]
    %v259 = vld [vmem:[#allocation5 + $0x1c] sm:$0xf]
    %v260 = vld [vmem:[#allocation5 + $0x20] sm:$0xf]
    %v261 = vld [vmem:[#allocation5 + $0x24] sm:$0xf]
    %v262 = vld [vmem:[#allocation5 + $0x28] sm:$0xf]
    %v263 = vld [vmem:[#allocation5 + $0x2c] sm:$0xf]
    %v264 = vld [vmem:[#allocation5 + $0x30] sm:$0xf]
    %v265 = vld [vmem:[#allocation5 + $0x34] sm:$0xf]
    %v266 = vld [vmem:[#allocation5 + $0x38] sm:$0xf]
    %v267 = vld [vmem:[#allocation5 + $0x3c] sm:$0xf]
    %v268 = vld [vmem:[#allocation5 + $0x40] sm:$0xf]
    %v269 = vld [vmem:[#allocation5 + $0x44] sm:$0xf]
    %v270 = vld [vmem:[#allocation5 + $0x48] sm:$0xf]
    %v271 = vld [vmem:[#allocation5 + $0x4c] sm:$0xf]
    %v272 = vld [vmem:[#allocation5 + $0x50] sm:$0xf]
    %v273 = vld [vmem:[#allocation5 + $0x54] sm:$0xf]
    %v274 = vld [vmem:[#allocation5 + $0x58] sm:$0xf]
    %v275 = vld [vmem:[#allocation5 + $0x5c] sm:$0xf]
    %v276 = vld [vmem:[#allocation5 + $0x60] sm:$0xf]
    %v277 = vld [vmem:[#allocation5 + $0x64] sm:$0xf]
    %v278 = vld [vmem:[#allocation5 + $0x68] sm:$0xf]
    %v279 = vld [vmem:[#allocation5 + $0x6c] sm:$0xf]
    %v280 = vld [vmem:[#allocation5 + $0x70] sm:$0xf]
    %v281 = vld [vmem:[#allocation5 + $0x74] sm:$0xf]
    %v282 = vld [vmem:[#allocation5 + $0x78] sm:$0xf]
    %v283 = vld [vmem:[#allocation5 + $0x7c] sm:$0xf]
    %v284 = vld [vmem:[#allocation5 + $0x80] sm:$0xf]
    %v285 = vld [vmem:[#allocation5 + $0x84] sm:$0xf]
    %v286 = vld [vmem:[#allocation5 + $0x88] sm:$0xf]
    %v287 = vld [vmem:[#allocation5 + $0x8c] sm:$0xf]
    %v288 = vld [vmem:[#allocation5 + $0x90] sm:$0xf]
    %v289 = vld [vmem:[#allocation5 + $0x94] sm:$0xf]
    %v290 = vld [vmem:[#allocation5 + $0x98] sm:$0xf]
    %v291 = vld [vmem:[#allocation5 + $0x9c] sm:$0xf]
    %v292 = vld [vmem:[#allocation5 + $0xa0] sm:$0xf]
    %v293 = vld [vmem:[#allocation5 + $0xa4] sm:$0xf]
    %v294 = vld [vmem:[#allocation5 + $0xa8] sm:$0xf]
    %v295 = vld [vmem:[#allocation5 + $0xac] sm:$0xf]
    %v296 = vld [vmem:[#allocation5 + $0xb0] sm:$0xf]
    %v297 = vld [vmem:[#allocation5 + $0xb4] sm:$0xf]
    %v298 = vld [vmem:[#allocation5 + $0xb8] sm:$0xf]
    %v299 = vld [vmem:[#allocation5 + $0xbc] sm:$0xf]
    %v300 = vld [vmem:[%s4] sm:$0x1]
    %v301 = vld [vmem:[%s5] sm:$0x1]
    %v302 = vld [vmem:[%s6] sm:$0x1]
    %v303 = vpack.c.bf16 %v225, %v222
    %v304 = vpack.c.bf16 %v233, %v230
    %v305 = vpack.c.bf16 %v241, %v238
    %v306 = vpack.c.bf16 %v249, %v246
    %v307 = vrot.slane %v222, 1
    %v308 = vrot.slane %v225, 1
    %v309 = vrot.slane %v230, 1
    %v310 = vrot.slane %v233, 1
    %v311 = vrot.slane %v238, 1
    %v312 = vrot.slane %v241, 1
    %v313 = vrot.slane %v246, 1
    %v314 = vrot.slane %v249, 1
    %v315 = vlaneseq
    %v316 = vshrl.u32 %v315, 7
    %vm317 = vcmp.lt.s32.totalorder %v316, 7
    %v318 = vsel %vm317, %v313, %v314
    %v319 = vsel %vm317, %v312, %v313
    %v320 = vsel %vm317, %v311, %v312
    %v321 = vsel %vm317, %v310, %v311
    %v322 = vsel %vm317, %v309, %v310
    %v323 = vsel %vm317, %v308, %v309
    %v324 = vsel %vm317, %v307, %v308
    %v325 = vsel %vm317, %v314, %v307
    %v326 = vpack.c.bf16 %v323, %v324
    %v327 = vpack.c.bf16 %v321, %v322
    %v328 = vpack.c.bf16 %v319, %v320
    %v329 = vpack.c.bf16 %v325, %v318
    %v330 = vrot.slane %v222, 2
    %v331 = vrot.slane %v225, 2
    %v332 = vrot.slane %v230, 2
    %v333 = vrot.slane %v233, 2
    %v334 = vrot.slane %v238, 2
    %v335 = vrot.slane %v241, 2
    %v336 = vrot.slane %v246, 2
    %v337 = vrot.slane %v249, 2
    %vm338 = vcmp.lt.s32.totalorder %v316, 6
    %v339 = vsel %vm338, %v336, %v337
    %v340 = vsel %vm338, %v335, %v336
    %v341 = vsel %vm338, %v334, %v335
    %v342 = vsel %vm338, %v333, %v334
    %v343 = vsel %vm338, %v332, %v333
    %v344 = vsel %vm338, %v331, %v332
    %v345 = vsel %vm338, %v330, %v331
    %v346 = vsel %vm338, %v337, %v330
    %v347 = vpack.c.bf16 %v344, %v345
    %v348 = vpack.c.bf16 %v342, %v343
    %v349 = vpack.c.bf16 %v340, %v341
    %v350 = vpack.c.bf16 %v346, %v339
    %v352 = vlaneseq
    %v353 = vshrl.u32 %v352, 7
    %v354 = vsub.s32 0, %v353
    %v355 = vrot.slane %v300, %v354
    %v405 = vunpack.c.l.b16 %v252
    %v406 = vunpack.c.l.b16 %v253
    %v407 = vunpack.c.l.b16 %v254
    %v408 = vunpack.c.l.b16 %v255
    %v409 = vunpack.c.l.b16 %v256
    %v410 = vunpack.c.l.b16 %v257
    %v411 = vunpack.c.l.b16 %v258
    %v412 = vunpack.c.l.b16 %v259
    %v413 = vunpack.c.l.b16 %v260
    %v414 = vunpack.c.l.b16 %v261
    %v415 = vunpack.c.l.b16 %v262
    %v416 = vunpack.c.l.b16 %v263
    %v417 = vunpack.c.l.b16 %v264
    %v418 = vunpack.c.l.b16 %v265
    %v419 = vunpack.c.l.b16 %v266
    %v420 = vunpack.c.l.b16 %v267
    %v421 = vunpack.c.l.b16 %v268
    %v422 = vunpack.c.l.b16 %v269
    %v423 = vunpack.c.l.b16 %v270
    %v424 = vunpack.c.l.b16 %v271
    %v425 = vunpack.c.l.b16 %v272
    %v426 = vunpack.c.l.b16 %v273
    %v427 = vunpack.c.l.b16 %v274
    %v428 = vunpack.c.l.b16 %v275
    %v429 = vunpack.c.l.b16 %v276
    %v430 = vunpack.c.l.b16 %v277
    %v431 = vunpack.c.l.b16 %v278
    %v432 = vunpack.c.l.b16 %v279
    %v433 = vunpack.c.l.b16 %v280
    %v434 = vunpack.c.l.b16 %v281
    %v435 = vunpack.c.l.b16 %v282
    %v436 = vunpack.c.l.b16 %v283
    %v437 = vunpack.c.l.b16 %v284
    %v438 = vunpack.c.l.b16 %v285
    %v439 = vunpack.c.l.b16 %v286
    %v440 = vunpack.c.l.b16 %v287
    %v441 = vunpack.c.l.b16 %v288
    %v442 = vunpack.c.l.b16 %v289
    %v443 = vunpack.c.l.b16 %v290
    %v444 = vunpack.c.l.b16 %v291
    %v445 = vunpack.c.l.b16 %v292
    %v446 = vunpack.c.l.b16 %v293
    %v447 = vunpack.c.l.b16 %v294
    %v448 = vunpack.c.l.b16 %v295
    %v449 = vunpack.c.l.b16 %v296
    %v450 = vunpack.c.l.b16 %v297
    %v451 = vunpack.c.l.b16 %v298
    %v452 = vunpack.c.l.b16 %v299
    %v453 = vpack.c.b16 %v406, %v405
    %v454 = vpack.c.b16 %v408, %v407
    %v455 = vpack.c.b16 %v410, %v409
    %v456 = vpack.c.b16 %v412, %v411
    %v457 = vpack.c.b16 %v414, %v413
    %v458 = vpack.c.b16 %v416, %v415
    %v459 = vpack.c.b16 %v418, %v417
    %v460 = vpack.c.b16 %v420, %v419
    %v461 = vpack.c.b16 %v422, %v421
    %v462 = vpack.c.b16 %v424, %v423
    %v463 = vpack.c.b16 %v426, %v425
    %v464 = vpack.c.b16 %v428, %v427
    %v465 = vpack.c.b16 %v430, %v429
    %v466 = vpack.c.b16 %v432, %v431
    %v467 = vpack.c.b16 %v434, %v433
    %v468 = vpack.c.b16 %v436, %v435
    %v469 = vpack.c.b16 %v438, %v437
    %v470 = vpack.c.b16 %v440, %v439
    %v471 = vpack.c.b16 %v442, %v441
    %v472 = vpack.c.b16 %v444, %v443
    %v473 = vpack.c.b16 %v446, %v445
    %v474 = vpack.c.b16 %v448, %v447
    %v475 = vpack.c.b16 %v450, %v449
    %v476 = vpack.c.b16 %v452, %v451
    %501 = vmatprep.subr.bf16.mxu0 0
    %502 = vmatpush1.bf16.msra.mxu0 %v453
    %503 = vmatprep.subr.bf16.mxu0 0
    %504 = vmatpush1.bf16.msra.mxu0 %v454
    %505 = vmatprep.subr.bf16.mxu0 0
    %506 = vmatpush1.bf16.msra.mxu0 %v455
    %507 = vmatprep.subr.bf16.mxu0 0
    %508 = vmatpush1.bf16.msra.mxu0 %v456
    %509 = vmatprep.subr.bf16.mxu0 0
    %510 = vmatpush1.bf16.msra.mxu0 %v457
    %511 = vmatprep.subr.bf16.mxu0 0
    %512 = vmatpush1.bf16.msra.mxu0 %v458
    %513 = vmatprep.subr.bf16.mxu0 0
    %514 = vmatpush1.bf16.msra.mxu0 %v459
    %515 = vmatprep.subr.bf16.mxu0 0
    %516 = vmatpush1.bf16.msra.mxu0 %v460
    %517 = vmatprep.subr.bf16.mxu0 0
    %518 = vmatpush1.bf16.msra.mxu0 %v461
    %519 = vmatprep.subr.bf16.mxu0 0
    %520 = vmatpush1.bf16.msra.mxu0 %v462
    %521 = vmatprep.subr.bf16.mxu0 0
    %522 = vmatpush1.bf16.msra.mxu0 %v463
    %523 = vmatprep.subr.bf16.mxu0 0
    %524 = vmatpush1.bf16.msra.mxu0 %v464
    %525 = vmatprep.subr.bf16.mxu0 0
    %526 = vmatpush1.bf16.msra.mxu0 %v465
    %527 = vmatprep.subr.bf16.mxu0 0
    %528 = vmatpush1.bf16.msra.mxu0 %v466
    %529 = vmatprep.subr.bf16.mxu0 0
    %530 = vmatpush1.bf16.msra.mxu0 %v467
    %531 = vmatprep.subr.bf16.mxu0 0
    %532 = vmatpush1.bf16.msra.mxu0 %v468
    %533 = vmatprep.mubr.bf16.mxu0 %v326
    %534 = vmatmul.mubr.bf16.gmra.mrb[0].mxu0 %v303
    %v535 = vpop.f32.mrb[0].mxu0
    %v536 = vadd.f32 %v355, %v535
    %v537 = vpop.f32.mrb[0].mxu0
    %v538 = vpop.f32.mrb[0].mxu0
    %v539 = vadd.f32 %v355, %v538
    %v540 = vpop.f32.mrb[0].mxu0
    %541 = vmatprep.mubr.bf16.mxu0 %v327
    %542 = vmatmul.mubr.bf16.gmra.mrb[0].mxu0 %v304
    %v543 = vpop.f32.mrb[0].mxu0
    %v544 = vadd.f32 %v355, %v543
    %v545 = vpop.f32.mrb[0].mxu0
    %v546 = vpop.f32.mrb[0].mxu0
    %v547 = vadd.f32 %v355, %v546
    %v548 = vpop.f32.mrb[0].mxu0
    %549 = vmatprep.mubr.bf16.mxu0 %v328
    %550 = vmatmul.mubr.bf16.gmra.mrb[0].mxu0 %v305
    %v551 = vpop.f32.mrb[0].mxu0
    %v552 = vadd.f32 %v355, %v551
    %v553 = vpop.f32.mrb[0].mxu0
    %v554 = vpop.f32.mrb[0].mxu0
    %v555 = vadd.f32 %v355, %v554
    %v556 = vpop.f32.mrb[0].mxu0
    %557 = vmatprep.mubr.bf16.mxu0 %v329
    %558 = vmatmul.mubr.bf16.gmra.mrb[0].mxu0 %v306
    %v559 = vpop.f32.mrb[0].mxu0
    %v560 = vadd.f32 %v355, %v559
    %v561 = vpop.f32.mrb[0].mxu0
    %v562 = vpop.f32.mrb[0].mxu0
    %v563 = vadd.f32 %v355, %v562
    %v564 = vpop.f32.mrb[0].mxu0
    %565 = vdwg.mxu0
    %566 = vmatprep.subr.bf16.mxu0 0
    %567 = vmatpush1.bf16.msra.mxu0 %v469
    %568 = vmatprep.subr.bf16.mxu0 0
    %569 = vmatpush1.bf16.msra.mxu0 %v470
    %570 = vmatprep.subr.bf16.mxu0 0
    %571 = vmatpush1.bf16.msra.mxu0 %v471
    %572 = vmatprep.subr.bf16.mxu0 0
    %573 = vmatpush1.bf16.msra.mxu0 %v472
    %574 = vmatprep.subr.bf16.mxu0 0
    %575 = vmatpush1.bf16.msra.mxu0 %v473
    %576 = vmatprep.subr.bf16.mxu0 0
    %577 = vmatpush1.bf16.msra.mxu0 %v474
    %578 = vmatprep.subr.bf16.mxu0 0
    %579 = vmatpush1.bf16.msra.mxu0 %v475
    %580 = vmatprep.subr.bf16.mxu0 0
    %581 = vmatpush1.bf16.msra.mxu0 %v476
    %582 = vmatprep.subr.bf16.mxu0 0
    %583 = vmatpush1.bf16.msra.mxu0 0
    %584 = vmatprep.subr.bf16.mxu0 0
    %585 = vmatpush1.bf16.msra.mxu0 0
    %586 = vmatprep.subr.bf16.mxu0 0
    %587 = vmatpush1.bf16.msra.mxu0 0
    %588 = vmatprep.subr.bf16.mxu0 0
    %589 = vmatpush1.bf16.msra.mxu0 0
    %590 = vmatprep.subr.bf16.mxu0 0
    %591 = vmatpush1.bf16.msra.mxu0 0
    %592 = vmatprep.subr.bf16.mxu0 0
    %593 = vmatpush1.bf16.msra.mxu0 0
    %594 = vmatprep.subr.bf16.mxu0 0
    %595 = vmatpush1.bf16.msra.mxu0 0
    %596 = vmatprep.subr.bf16.mxu0 0
    %597 = vmatpush1.bf16.msra.mxu0 0
    %598 = vmatprep.mubr.bf16.mxu0 0
    %599 = vmatmul.mubr.bf16.gmra.mrb[0].mxu0 %v347
    %v600 = vpop.f32.mrb[0].mxu0
    %v601 = vadd.f32 %v536, %v600
    %v602 = vpop.f32.mrb[0].mxu0
    %v603 = vpop.f32.mrb[0].mxu0
    %v604 = vadd.f32 %v539, %v603
    %v605 = vpop.f32.mrb[0].mxu0
    %606 = vmatprep.mubr.bf16.mxu0 0
    %607 = vmatmul.mubr.bf16.gmra.mrb[0].mxu0 %v348
    %v608 = vpop.f32.mrb[0].mxu0
    %v609 = vadd.f32 %v544, %v608
    %v610 = vpop.f32.mrb[0].mxu0
    %v611 = vpop.f32.mrb[0].mxu0
    %v612 = vadd.f32 %v547, %v611
    %v613 = vpop.f32.mrb[0].mxu0
    %614 = vmatprep.mubr.bf16.mxu0 0
    %615 = vmatmul.mubr.bf16.gmra.mrb[0].mxu0 %v349
    %v616 = vpop.f32.mrb[0].mxu0
    %v617 = vadd.f32 %v552, %v616
    %v618 = vpop.f32.mrb[0].mxu0
    %v619 = vpop.f32.mrb[0].mxu0
    %v620 = vadd.f32 %v555, %v619
    %v621 = vpop.f32.mrb[0].mxu0
    %622 = vmatprep.mubr.bf16.mxu0 0
    %623 = vmatmul.mubr.bf16.gmra.mrb[0].mxu0 %v350
    %v624 = vpop.f32.mrb[0].mxu0
    %v625 = vadd.f32 %v560, %v624
    %v626 = vpop.f32.mrb[0].mxu0
    %v627 = vpop.f32.mrb[0].mxu0
    %v628 = vadd.f32 %v563, %v627
    %v629 = vpop.f32.mrb[0].mxu0
    %630 = vdwg.mxu0
    %v631 = vmax.f32 %v601, 0.0
    %v632 = vmax.f32 %v604, 0.0
    %v633 = vmax.f32 %v609, 0.0
    %v634 = vmax.f32 %v612, 0.0
    %v635 = vmax.f32 %v617, 0.0
    %v636 = vmax.f32 %v620, 0.0
    %v637 = vmax.f32 %v625, 0.0
    %v638 = vmax.f32 %v628, 0.0
    %vm639 = vcmp.lt.s32.totalorder %v85, 30
    %vm640 = vcmp.lt.s32.totalorder %v86, 30
    %vm641 = vcmp.lt.s32.totalorder %v87, 30
    %vm642 = vcmp.lt.s32.totalorder %v88, 30
    %vm643 = vcmp.lt.s32.totalorder %v89, 30
    %vm644 = vcmp.lt.s32.totalorder %v90, 30
    %vm645 = vcmp.lt.s32.totalorder %v91, 30
    %vm646 = vcmp.lt.s32.totalorder %v92, 30
    %v647 = vsel %vm639, 1, 0
    %v648 = vsel %vm640, 1, 0
    %v649 = vsel %vm641, 1, 0
    %v650 = vsel %vm642, 1, 0
    %v651 = vsel %vm643, 1, 0
    %v652 = vsel %vm644, 1, 0
    %v653 = vsel %vm645, 1, 0
    %v654 = vsel %vm646, 1, 0
    %v655 = vcvt.s32.f32 %v647
    %v656 = vcvt.s32.f32 %v648
    %v657 = vcvt.s32.f32 %v649
    %v658 = vcvt.s32.f32 %v650
    %v659 = vcvt.s32.f32 %v651
    %v660 = vcvt.s32.f32 %v652
    %v661 = vcvt.s32.f32 %v653
    %v662 = vcvt.s32.f32 %v654
    %664 = vset.pattern.permute.xlu0 0
    %665 = vperm.xlu0 %664, %v655
    %v666 = vpop.permute.xlu0 %665
    %669 = vset.pattern.permute.xlu0 0
    %670 = vperm.xlu0 %669, %v656
    %v671 = vpop.permute.xlu0 %670
    %674 = vset.pattern.permute.xlu0 0
    %675 = vperm.xlu0 %674, %v657
    %v676 = vpop.permute.xlu0 %675
    %679 = vset.pattern.permute.xlu0 0
    %680 = vperm.xlu0 %679, %v658
    %v681 = vpop.permute.xlu0 %680
    %684 = vset.pattern.permute.xlu0 0
    %685 = vperm.xlu0 %684, %v659
    %v686 = vpop.permute.xlu0 %685
    %689 = vset.pattern.permute.xlu0 0
    %690 = vperm.xlu0 %689, %v660
    %v691 = vpop.permute.xlu0 %690
    %694 = vset.pattern.permute.xlu0 0
    %695 = vperm.xlu0 %694, %v661
    %v696 = vpop.permute.xlu0 %695
    %699 = vset.pattern.permute.xlu0 0
    %700 = vperm.xlu0 %699, %v662
    %v701 = vpop.permute.xlu0 %700
    %v703 = vmul.f32 %v631, %v666
    %v704 = vmul.f32 %v632, %v671
    %v705 = vmul.f32 %v633, %v676
    %v706 = vmul.f32 %v634, %v681
    %v707 = vmul.f32 %v635, %v686
    %v708 = vmul.f32 %v636, %v691
    %v709 = vmul.f32 %v637, %v696
    %v710 = vmul.f32 %v638, %v701
    %v711 = vadd.f32 %v703, %v704
    %v712 = vadd.f32 %v711, %v705
    %v713 = vadd.f32 %v712, %v706
    %v714 = vadd.f32 %v713, %v707
    %v715 = vadd.f32 %v714, %v708
    %v716 = vadd.f32 %v715, %v709
    %v717 = vadd.f32 %v716, %v710
    %v718 = vrot.slane %v717, 4
    %v719 = vadd.f32 %v717, %v718
    %v720 = vrot.slane %v719, 2
    %v721 = vadd.f32 %v719, %v720
    %v722 = vrot.slane %v721, 1
    %v723 = vadd.f32 %v721, %v722
    %v724 = vmul.f32 %v723, 0.016666668
    %v725 = vsub.f32 %v631, %v724
    %v726 = vsub.f32 %v632, %v724
    %v727 = vsub.f32 %v633, %v724
    %v728 = vsub.f32 %v634, %v724
    %v729 = vsub.f32 %v635, %v724
    %v730 = vsub.f32 %v636, %v724
    %v731 = vsub.f32 %v637, %v724
    %v732 = vsub.f32 %v638, %v724
    %v733 = vmul.f32 %v725, %v666
    %v734 = vmul.f32 %v726, %v671
    %v735 = vmul.f32 %v727, %v676
    %v736 = vmul.f32 %v728, %v681
    %v737 = vmul.f32 %v729, %v686
    %v738 = vmul.f32 %v730, %v691
    %v739 = vmul.f32 %v731, %v696
    %v740 = vmul.f32 %v732, %v701
    %v741 = vmul.f32 %v733, %v733
    %v742 = vmul.f32 %v734, %v734
    %v743 = vmul.f32 %v735, %v735
    %v744 = vmul.f32 %v736, %v736
    %v745 = vmul.f32 %v737, %v737
    %v746 = vmul.f32 %v738, %v738
    %v747 = vmul.f32 %v739, %v739
    %v748 = vmul.f32 %v740, %v740
    %v749 = vadd.f32 %v741, %v742
    %v750 = vadd.f32 %v749, %v743
    %v751 = vadd.f32 %v750, %v744
    %v752 = vadd.f32 %v751, %v745
    %v753 = vadd.f32 %v752, %v746
    %v754 = vadd.f32 %v753, %v747
    %v755 = vadd.f32 %v754, %v748
    %v756 = vrot.slane %v755, 4
    %v757 = vadd.f32 %v755, %v756
    %v758 = vrot.slane %v757, 2
    %v759 = vadd.f32 %v757, %v758
    %v760 = vrot.slane %v759, 1
    %v761 = vadd.f32 %v759, %v760
    %v762 = vmul.f32 %v761, 0.016666668
    %v763 = vadd.f32 %v762, 1e-05
    %v764 = vrsqrt.pop %v763
    %v765 = vmul.f32 %v301, %v764
    %v766 = vmul.f32 %v724, %v765
    %v767 = vsub.f32 %v302, %v766
    %v769 = vlaneseq
    %v770 = vshrl.u32 %v769, 7
    %v771 = vsub.s32 0, %v770
    %v772 = vrot.slane %v765, %v771
    %v774 = vmul.f32 %v631, %v772
    %v775 = vmul.f32 %v632, %v772
    %v776 = vmul.f32 %v633, %v772
    %v777 = vmul.f32 %v634, %v772
    %v778 = vmul.f32 %v635, %v772
    %v779 = vmul.f32 %v636, %v772
    %v780 = vmul.f32 %v637, %v772
    %v781 = vmul.f32 %v638, %v772
    %v783 = vlaneseq
    %v784 = vshrl.u32 %v783, 7
    %v785 = vsub.s32 0, %v784
    %v786 = vrot.slane %v767, %v785
    %v788 = vadd.f32 %v774, %v786
    %v789 = vadd.f32 %v775, %v786
    %v790 = vadd.f32 %v776, %v786
    %v791 = vadd.f32 %v777, %v786
    %v792 = vadd.f32 %v778, %v786
    %v793 = vadd.f32 %v779, %v786
    %v794 = vadd.f32 %v780, %v786
    %v795 = vadd.f32 %v781, %v786
    %s796 = smul.u32 4, 96
    %s797 = smul.u32 %s796, 1
    %s798 = sshll.u32 %s797, 4
    %799 = dma.done [#allocation4], %s798
    %v800 = vld [vmem:[#allocation2] sm:$0xff]
    %v801 = vld [vmem:[#allocation2 + $0x8] sm:$0xff]
    %v802 = vld [vmem:[#allocation2 + $0x10] sm:$0xff]
    %v803 = vld [vmem:[#allocation2 + $0x18] sm:$0xff]
    %v804 = vld [vmem:[#allocation2 + $0x20] sm:$0xff]
    %v805 = vld [vmem:[#allocation2 + $0x28] sm:$0xff]
    %v806 = vld [vmem:[#allocation2 + $0x30] sm:$0xff]
    %v807 = vld [vmem:[#allocation2 + $0x38] sm:$0xff]
    %v808 = vld [vmem:[#allocation2 + $0x40] sm:$0xff]
    %v809 = vld [vmem:[#allocation2 + $0x48] sm:$0xff]
    %v810 = vld [vmem:[#allocation2 + $0x50] sm:$0xff]
    %v811 = vld [vmem:[#allocation2 + $0x58] sm:$0xff]
    %v812 = vld [vmem:[#allocation2 + $0x60] sm:$0xff]
    %v813 = vld [vmem:[#allocation2 + $0x68] sm:$0xff]
    %v814 = vld [vmem:[#allocation2 + $0x70] sm:$0xff]
    %v815 = vld [vmem:[#allocation2 + $0x78] sm:$0xff]
    %v816 = vld [vmem:[#allocation2 + $0x80] sm:$0xff]
    %v817 = vld [vmem:[#allocation2 + $0x88] sm:$0xff]
    %v818 = vld [vmem:[#allocation2 + $0x90] sm:$0xff]
    %v819 = vld [vmem:[#allocation2 + $0x98] sm:$0xff]
    %v820 = vld [vmem:[#allocation2 + $0xa0] sm:$0xff]
    %v821 = vld [vmem:[#allocation2 + $0xa8] sm:$0xff]
    %v822 = vld [vmem:[#allocation2 + $0xb0] sm:$0xff]
    %v823 = vld [vmem:[#allocation2 + $0xb8] sm:$0xff]
    %v824 = vld [vmem:[#allocation2 + $0xc0] sm:$0xff]
    %v825 = vld [vmem:[#allocation2 + $0xc8] sm:$0xff]
    %v826 = vld [vmem:[#allocation2 + $0xd0] sm:$0xff]
    %v827 = vld [vmem:[#allocation2 + $0xd8] sm:$0xff]
    %v828 = vld [vmem:[#allocation2 + $0xe0] sm:$0xff]
    %v829 = vld [vmem:[#allocation2 + $0xe8] sm:$0xff]
    %v830 = vld [vmem:[#allocation2 + $0xf0] sm:$0xff]
    %v831 = vld [vmem:[#allocation2 + $0xf8] sm:$0xff]
    %v832 = vld [vmem:[#allocation2 + $0x100] sm:$0xff]
    %v833 = vld [vmem:[#allocation2 + $0x108] sm:$0xff]
    %v834 = vld [vmem:[#allocation2 + $0x110] sm:$0xff]
    %v835 = vld [vmem:[#allocation2 + $0x118] sm:$0xff]
    %v836 = vld [vmem:[#allocation2 + $0x120] sm:$0xff]
    %v837 = vld [vmem:[#allocation2 + $0x128] sm:$0xff]
    %v838 = vld [vmem:[#allocation2 + $0x130] sm:$0xff]
    %v839 = vld [vmem:[#allocation2 + $0x138] sm:$0xff]
    %v840 = vld [vmem:[#allocation2 + $0x140] sm:$0xff]
    %v841 = vld [vmem:[#allocation2 + $0x148] sm:$0xff]
    %v842 = vld [vmem:[#allocation2 + $0x150] sm:$0xff]
    %v843 = vld [vmem:[#allocation2 + $0x158] sm:$0xff]
    %v844 = vld [vmem:[#allocation2 + $0x160] sm:$0xff]
    %v845 = vld [vmem:[#allocation2 + $0x168] sm:$0xff]
    %v846 = vld [vmem:[#allocation2 + $0x170] sm:$0xff]
    %v847 = vld [vmem:[#allocation2 + $0x178] sm:$0xff]
    %v848 = vld [vmem:[%s8] sm:$0x1]
    %v849 = vld [vmem:[%s9] sm:$0x1]
    %v850 = vld [vmem:[%s10] sm:$0x1]
    %v851 = vpack.c.bf16 %v789, %v788
    %v852 = vpack.c.bf16 %v791, %v790
    %v853 = vpack.c.bf16 %v793, %v792
    %v854 = vpack.c.bf16 %v795, %v794
    %v855 = vrot.slane %v788, 1
    %v856 = vrot.slane %v789, 1
    %v857 = vrot.slane %v790, 1
    %v858 = vrot.slane %v791, 1
    %v859 = vrot.slane %v792, 1
    %v860 = vrot.slane %v793, 1
    %v861 = vrot.slane %v794, 1
    %v862 = vrot.slane %v795, 1
    %v863 = vsel %vm317, %v861, %v862
    %v864 = vsel %vm317, %v860, %v861
    %v865 = vsel %vm317, %v859, %v860
    %v866 = vsel %vm317, %v858, %v859
    %v867 = vsel %vm317, %v857, %v858
    %v868 = vsel %vm317, %v856, %v857
    %v869 = vsel %vm317, %v855, %v856
    %v870 = vsel %vm317, %v862, %v855
    %v871 = vpack.c.bf16 %v868, %v869
    %v872 = vpack.c.bf16 %v866, %v867
    %v873 = vpack.c.bf16 %v864, %v865
    %v874 = vpack.c.bf16 %v870, %v863
    %v875 = vrot.slane %v788, 2
    %v876 = vrot.slane %v789, 2
    %v877 = vrot.slane %v790, 2
    %v878 = vrot.slane %v791, 2
    %v879 = vrot.slane %v792, 2
    %v880 = vrot.slane %v793, 2
    %v881 = vrot.slane %v794, 2
    %v882 = vrot.slane %v795, 2
    %v883 = vsel %vm338, %v881, %v882
    %v884 = vsel %vm338, %v880, %v881
    %v885 = vsel %vm338, %v879, %v880
    %v886 = vsel %vm338, %v878, %v879
    %v887 = vsel %vm338, %v877, %v878
    %v888 = vsel %vm338, %v876, %v877
    %v889 = vsel %vm338, %v875, %v876
    %v890 = vsel %vm338, %v882, %v875
    %v891 = vpack.c.bf16 %v888, %v889
    %v892 = vpack.c.bf16 %v886, %v887
    %v893 = vpack.c.bf16 %v884, %v885
    %v894 = vpack.c.bf16 %v890, %v883
    %v895 = vrot.slane %v788, 3
    %v896 = vrot.slane %v789, 3
    %v897 = vrot.slane %v790, 3
    %v898 = vrot.slane %v791, 3
    %v899 = vrot.slane %v792, 3
    %v900 = vrot.slane %v793, 3
    %v901 = vrot.slane %v794, 3
    %v902 = vrot.slane %v795, 3
    %vm903 = vcmp.lt.s32.totalorder %v316, 5
    %v904 = vsel %vm903, %v901, %v902
    %v905 = vsel %vm903, %v900, %v901
    %v906 = vsel %vm903, %v899, %v900
    %v907 = vsel %vm903, %v898, %v899
    %v908 = vsel %vm903, %v897, %v898
    %v909 = vsel %vm903, %v896, %v897
    %v910 = vsel %vm903, %v895, %v896
    %v911 = vsel %vm903, %v902, %v895
    %v912 = vpack.c.bf16 %v909, %v910
    %v913 = vpack.c.bf16 %v907, %v908
    %v914 = vpack.c.bf16 %v905, %v906
    %v915 = vpack.c.bf16 %v911, %v904
    %v916 = vrot.slane %v788, 4
    %v917 = vrot.slane %v789, 4
    %v918 = vrot.slane %v790, 4
    %v919 = vrot.slane %v791, 4
    %v920 = vrot.slane %v792, 4
    %v921 = vrot.slane %v793, 4
    %v922 = vrot.slane %v794, 4
    %v923 = vrot.slane %v795, 4
    %vm924 = vcmp.lt.s32.totalorder %v316, 4
    %v925 = vsel %vm924, %v922, %v923
    %v926 = vsel %vm924, %v921, %v922
    %v927 = vsel %vm924, %v920, %v921
    %v928 = vsel %vm924, %v919, %v920
    %v929 = vsel %vm924, %v918, %v919
    %v930 = vsel %vm924, %v917, %v918
    %v931 = vsel %vm924, %v916, %v917
    %v932 = vsel %vm924, %v923, %v916
    %v933 = vpack.c.bf16 %v930, %v931
    %v934 = vpack.c.bf16 %v928, %v929
    %v935 = vpack.c.bf16 %v926, %v927
    %v936 = vpack.c.bf16 %v932, %v925
    %v937 = vrot.slane %v788, 5
    %v938 = vrot.slane %v789, 5
    %v939 = vrot.slane %v790, 5
    %v940 = vrot.slane %v791, 5
    %v941 = vrot.slane %v792, 5
    %v942 = vrot.slane %v793, 5
    %v943 = vrot.slane %v794, 5
    %v944 = vrot.slane %v795, 5
    %vm945 = vcmp.lt.s32.totalorder %v316, 3
    %v946 = vsel %vm945, %v943, %v944
    %v947 = vsel %vm945, %v942, %v943
    %v948 = vsel %vm945, %v941, %v942
    %v949 = vsel %vm945, %v940, %v941
    %v950 = vsel %vm945, %v939, %v940
    %v951 = vsel %vm945, %v938, %v939
    %v952 = vsel %vm945, %v937, %v938
    %v953 = vsel %vm945, %v944, %v937
    %v954 = vpack.c.bf16 %v951, %v952
    %v955 = vpack.c.bf16 %v949, %v950
    %v956 = vpack.c.bf16 %v947, %v948
    %v957 = vpack.c.bf16 %v953, %v946
    %v959 = vlaneseq
    %v960 = vshrl.u32 %v959, 7
    %v961 = vsub.s32 0, %v960
    %v962 = vrot.slane %v848, %v961
    %964 = vmatprep.subr.bf16.mxu0 0
    %965 = vmatpush1.bf16.msra.mxu0 %v800
    %966 = vmatprep.subr.bf16.mxu0 0
    %967 = vmatpush1.bf16.msra.mxu0 %v801
    %968 = vmatprep.subr.bf16.mxu0 0
    %969 = vmatpush1.bf16.msra.mxu0 %v802
    %970 = vmatprep.subr.bf16.mxu0 0
    %971 = vmatpush1.bf16.msra.mxu0 %v803
    %972 = vmatprep.subr.bf16.mxu0 0
    %973 = vmatpush1.bf16.msra.mxu0 %v804
    %974 = vmatprep.subr.bf16.mxu0 0
    %975 = vmatpush1.bf16.msra.mxu0 %v805
    %976 = vmatprep.subr.bf16.mxu0 0
    %977 = vmatpush1.bf16.msra.mxu0 %v806
    %978 = vmatprep.subr.bf16.mxu0 0
    %979 = vmatpush1.bf16.msra.mxu0 %v807
    %980 = vmatprep.subr.bf16.mxu0 0
    %981 = vmatpush1.bf16.msra.mxu0 %v808
    %982 = vmatprep.subr.bf16.mxu0 0
    %983 = vmatpush1.bf16.msra.mxu0 %v809
    %984 = vmatprep.subr.bf16.mxu0 0
    %985 = vmatpush1.bf16.msra.mxu0 %v810
    %986 = vmatprep.subr.bf16.mxu0 0
    %987 = vmatpush1.bf16.msra.mxu0 %v811
    %988 = vmatprep.subr.bf16.mxu0 0
    %989 = vmatpush1.bf16.msra.mxu0 %v812
    %990 = vmatprep.subr.bf16.mxu0 0
    %991 = vmatpush1.bf16.msra.mxu0 %v813
    %992 = vmatprep.subr.bf16.mxu0 0
    %993 = vmatpush1.bf16.msra.mxu0 %v814
    %994 = vmatprep.subr.bf16.mxu0 0
    %995 = vmatpush1.bf16.msra.mxu0 %v815
    %996 = vmatprep.mubr.bf16.mxu0 %v871
    %997 = vmatmul.mubr.bf16.gmra.mrb[0].mxu0 %v851
    %v998 = vpop.f32.mrb[0].mxu0
    %v999 = vadd.f32 %v962, %v998
    %v1000 = vpop.f32.mrb[0].mxu0
    %v1001 = vpop.f32.mrb[0].mxu0
    %v1002 = vadd.f32 %v962, %v1001
    %v1003 = vpop.f32.mrb[0].mxu0
    %1004 = vmatprep.mubr.bf16.mxu0 %v872
    %1005 = vmatmul.mubr.bf16.gmra.mrb[0].mxu0 %v852
    %v1006 = vpop.f32.mrb[0].mxu0
    %v1007 = vadd.f32 %v962, %v1006
    %v1008 = vpop.f32.mrb[0].mxu0
    %v1009 = vpop.f32.mrb[0].mxu0
    %v1010 = vadd.f32 %v962, %v1009
    %v1011 = vpop.f32.mrb[0].mxu0
    %1012 = vmatprep.mubr.bf16.mxu0 %v873
    %1013 = vmatmul.mubr.bf16.gmra.mrb[0].mxu0 %v853
    %v1014 = vpop.f32.mrb[0].mxu0
    %v1015 = vadd.f32 %v962, %v1014
    %v1016 = vpop.f32.mrb[0].mxu0
    %v1017 = vpop.f32.mrb[0].mxu0
    %v1018 = vadd.f32 %v962, %v1017
    %v1019 = vpop.f32.mrb[0].mxu0
    %1020 = vmatprep.mubr.bf16.mxu0 %v874
    %1021 = vmatmul.mubr.bf16.gmra.mrb[0].mxu0 %v854
    %v1022 = vpop.f32.mrb[0].mxu0
    %v1023 = vadd.f32 %v962, %v1022
    %v1024 = vpop.f32.mrb[0].mxu0
    %v1025 = vpop.f32.mrb[0].mxu0
    %v1026 = vadd.f32 %v962, %v1025
    %v1027 = vpop.f32.mrb[0].mxu0
    %1028 = vdwg.mxu0
    %1029 = vmatprep.subr.bf16.mxu0 0
    %1030 = vmatpush1.bf16.msra.mxu0 %v816
    %1031 = vmatprep.subr.bf16.mxu0 0
    %1032 = vmatpush1.bf16.msra.mxu0 %v817
    %1033 = vmatprep.subr.bf16.mxu0 0
    %1034 = vmatpush1.bf16.msra.mxu0 %v818
    %1035 = vmatprep.subr.bf16.mxu0 0
    %1036 = vmatpush1.bf16.msra.mxu0 %v819
    %1037 = vmatprep.subr.bf16.mxu0 0
    %1038 = vmatpush1.bf16.msra.mxu0 %v820
    %1039 = vmatprep.subr.bf16.mxu0 0
    %1040 = vmatpush1.bf16.msra.mxu0 %v821
    %1041 = vmatprep.subr.bf16.mxu0 0
    %1042 = vmatpush1.bf16.msra.mxu0 %v822
    %1043 = vmatprep.subr.bf16.mxu0 0
    %1044 = vmatpush1.bf16.msra.mxu0 %v823
    %1045 = vmatprep.subr.bf16.mxu0 0
    %1046 = vmatpush1.bf16.msra.mxu0 %v824
    %1047 = vmatprep.subr.bf16.mxu0 0
    %1048 = vmatpush1.bf16.msra.mxu0 %v825
    %1049 = vmatprep.subr.bf16.mxu0 0
    %1050 = vmatpush1.bf16.msra.mxu0 %v826
    %1051 = vmatprep.subr.bf16.mxu0 0
    %1052 = vmatpush1.bf16.msra.mxu0 %v827
    %1053 = vmatprep.subr.bf16.mxu0 0
    %1054 = vmatpush1.bf16.msra.mxu0 %v828
    %1055 = vmatprep.subr.bf16.mxu0 0
    %1056 = vmatpush1.bf16.msra.mxu0 %v829
    %1057 = vmatprep.subr.bf16.mxu0 0
    %1058 = vmatpush1.bf16.msra.mxu0 %v830
    %1059 = vmatprep.subr.bf16.mxu0 0
    %1060 = vmatpush1.bf16.msra.mxu0 %v831
    %1061 = vmatprep.mubr.bf16.mxu0 %v912
    %1062 = vmatmul.mubr.bf16.gmra.mrb[0].mxu0 %v891
    %v1063 = vpop.f32.mrb[0].mxu0
    %v1064 = vadd.f32 %v999, %v1063
    %v1065 = vpop.f32.mrb[0].mxu0
    %v1066 = vpop.f32.mrb[0].mxu0
    %v1067 = vadd.f32 %v1002, %v1066
    %v1068 = vpop.f32.mrb[0].mxu0
    %1069 = vmatprep.mubr.bf16.mxu0 %v913
    %1070 = vmatmul.mubr.bf16.gmra.mrb[0].mxu0 %v892
    %v1071 = vpop.f32.mrb[0].mxu0
    %v1072 = vadd.f32 %v1007, %v1071
    %v1073 = vpop.f32.mrb[0].mxu0
    %v1074 = vpop.f32.mrb[0].mxu0
    %v1075 = vadd.f32 %v1010, %v1074
    %v1076 = vpop.f32.mrb[0].mxu0
    %1077 = vmatprep.mubr.bf16.mxu0 %v914
    %1078 = vmatmul.mubr.bf16.gmra.mrb[0].mxu0 %v893
    %v1079 = vpop.f32.mrb[0].mxu0
    %v1080 = vadd.f32 %v1015, %v1079
    %v1081 = vpop.f32.mrb[0].mxu0
    %v1082 = vpop.f32.mrb[0].mxu0
    %v1083 = vadd.f32 %v1018, %v1082
    %v1084 = vpop.f32.mrb[0].mxu0
    %1085 = vmatprep.mubr.bf16.mxu0 %v915
    %1086 = vmatmul.mubr.bf16.gmra.mrb[0].mxu0 %v894
    %v1087 = vpop.f32.mrb[0].mxu0
    %v1088 = vadd.f32 %v1023, %v1087
    %v1089 = vpop.f32.mrb[0].mxu0
    %v1090 = vpop.f32.mrb[0].mxu0
    %v1091 = vadd.f32 %v1026, %v1090
    %v1092 = vpop.f32.mrb[0].mxu0
    %1093 = vdwg.mxu0
    %1094 = vmatprep.subr.bf16.mxu0 0
    %1095 = vmatpush1.bf16.msra.mxu0 %v832
    %1096 = vmatprep.subr.bf16.mxu0 0
    %1097 = vmatpush1.bf16.msra.mxu0 %v833
    %1098 = vmatprep.subr.bf16.mxu0 0
    %1099 = vmatpush1.bf16.msra.mxu0 %v834
    %1100 = vmatprep.subr.bf16.mxu0 0
    %1101 = vmatpush1.bf16.msra.mxu0 %v835
    %1102 = vmatprep.subr.bf16.mxu0 0
    %1103 = vmatpush1.bf16.msra.mxu0 %v836
    %1104 = vmatprep.subr.bf16.mxu0 0
    %1105 = vmatpush1.bf16.msra.mxu0 %v837
    %1106 = vmatprep.subr.bf16.mxu0 0
    %1107 = vmatpush1.bf16.msra.mxu0 %v838
    %1108 = vmatprep.subr.bf16.mxu0 0
    %1109 = vmatpush1.bf16.msra.mxu0 %v839
    %1110 = vmatprep.subr.bf16.mxu0 0
    %1111 = vmatpush1.bf16.msra.mxu0 %v840
    %1112 = vmatprep.subr.bf16.mxu0 0
    %1113 = vmatpush1.bf16.msra.mxu0 %v841
    %1114 = vmatprep.subr.bf16.mxu0 0
    %1115 = vmatpush1.bf16.msra.mxu0 %v842
    %1116 = vmatprep.subr.bf16.mxu0 0
    %1117 = vmatpush1.bf16.msra.mxu0 %v843
    %1118 = vmatprep.subr.bf16.mxu0 0
    %1119 = vmatpush1.bf16.msra.mxu0 %v844
    %1120 = vmatprep.subr.bf16.mxu0 0
    %1121 = vmatpush1.bf16.msra.mxu0 %v845
    %1122 = vmatprep.subr.bf16.mxu0 0
    %1123 = vmatpush1.bf16.msra.mxu0 %v846
    %1124 = vmatprep.subr.bf16.mxu0 0
    %1125 = vmatpush1.bf16.msra.mxu0 %v847
    %1126 = vmatprep.mubr.bf16.mxu0 %v954
    %1127 = vmatmul.mubr.bf16.gmra.mrb[0].mxu0 %v933
    %v1128 = vpop.f32.mrb[0].mxu0
    %v1129 = vadd.f32 %v1064, %v1128
    %v1130 = vpop.f32.mrb[0].mxu0
    %v1131 = vpop.f32.mrb[0].mxu0
    %v1132 = vadd.f32 %v1067, %v1131
    %v1133 = vpop.f32.mrb[0].mxu0
    %1134 = vmatprep.mubr.bf16.mxu0 %v955
    %1135 = vmatmul.mubr.bf16.gmra.mrb[0].mxu0 %v934
    %v1136 = vpop.f32.mrb[0].mxu0
    %v1137 = vadd.f32 %v1072, %v1136
    %v1138 = vpop.f32.mrb[0].mxu0
    %v1139 = vpop.f32.mrb[0].mxu0
    %v1140 = vadd.f32 %v1075, %v1139
    %v1141 = vpop.f32.mrb[0].mxu0
    %1142 = vmatprep.mubr.bf16.mxu0 %v956
    %1143 = vmatmul.mubr.bf16.gmra.mrb[0].mxu0 %v935
    %v1144 = vpop.f32.mrb[0].mxu0
    %v1145 = vadd.f32 %v1080, %v1144
    %v1146 = vpop.f32.mrb[0].mxu0
    %v1147 = vpop.f32.mrb[0].mxu0
    %v1148 = vadd.f32 %v1083, %v1147
    %v1149 = vpop.f32.mrb[0].mxu0
    %1150 = vmatprep.mubr.bf16.mxu0 %v957
    %1151 = vmatmul.mubr.bf16.gmra.mrb[0].mxu0 %v936
    %v1152 = vpop.f32.mrb[0].mxu0
    %v1153 = vadd.f32 %v1088, %v1152
    %v1154 = vpop.f32.mrb[0].mxu0
    %v1155 = vpop.f32.mrb[0].mxu0
    %v1156 = vadd.f32 %v1091, %v1155
    %v1157 = vpop.f32.mrb[0].mxu0
    %1158 = vdwg.mxu0
    %v1159 = vmax.f32 %v1129, 0.0
    %v1160 = vmax.f32 %v1132, 0.0
    %v1161 = vmax.f32 %v1137, 0.0
    %v1162 = vmax.f32 %v1140, 0.0
    %v1163 = vmax.f32 %v1145, 0.0
    %v1164 = vmax.f32 %v1148, 0.0
    %v1165 = vmax.f32 %v1153, 0.0
    %v1166 = vmax.f32 %v1156, 0.0
    %vm1167 = vcmp.lt.s32.totalorder %v85, 25
    %vm1168 = vcmp.lt.s32.totalorder %v86, 25
    %vm1169 = vcmp.lt.s32.totalorder %v87, 25
    %vm1170 = vcmp.lt.s32.totalorder %v88, 25
    %vm1171 = vcmp.lt.s32.totalorder %v89, 25
    %vm1172 = vcmp.lt.s32.totalorder %v90, 25
    %vm1173 = vcmp.lt.s32.totalorder %v91, 25
    %vm1174 = vcmp.lt.s32.totalorder %v92, 25
    %v1175 = vsel %vm1167, 1, 0
    %v1176 = vsel %vm1168, 1, 0
    %v1177 = vsel %vm1169, 1, 0
    %v1178 = vsel %vm1170, 1, 0
    %v1179 = vsel %vm1171, 1, 0
    %v1180 = vsel %vm1172, 1, 0
    %v1181 = vsel %vm1173, 1, 0
    %v1182 = vsel %vm1174, 1, 0
    %v1183 = vcvt.s32.f32 %v1175
    %v1184 = vcvt.s32.f32 %v1176
    %v1185 = vcvt.s32.f32 %v1177
    %v1186 = vcvt.s32.f32 %v1178
    %v1187 = vcvt.s32.f32 %v1179
    %v1188 = vcvt.s32.f32 %v1180
    %v1189 = vcvt.s32.f32 %v1181
    %v1190 = vcvt.s32.f32 %v1182
    %1192 = vset.pattern.permute.xlu0 0
    %1193 = vperm.xlu0 %1192, %v1183
    %v1194 = vpop.permute.xlu0 %1193
    %1197 = vset.pattern.permute.xlu0 0
    %1198 = vperm.xlu0 %1197, %v1184
    %v1199 = vpop.permute.xlu0 %1198
    %1202 = vset.pattern.permute.xlu0 0
    %1203 = vperm.xlu0 %1202, %v1185
    %v1204 = vpop.permute.xlu0 %1203
    %1207 = vset.pattern.permute.xlu0 0
    %1208 = vperm.xlu0 %1207, %v1186
    %v1209 = vpop.permute.xlu0 %1208
    %1212 = vset.pattern.permute.xlu0 0
    %1213 = vperm.xlu0 %1212, %v1187
    %v1214 = vpop.permute.xlu0 %1213
    %1217 = vset.pattern.permute.xlu0 0
    %1218 = vperm.xlu0 %1217, %v1188
    %v1219 = vpop.permute.xlu0 %1218
    %1222 = vset.pattern.permute.xlu0 0
    %1223 = vperm.xlu0 %1222, %v1189
    %v1224 = vpop.permute.xlu0 %1223
    %1227 = vset.pattern.permute.xlu0 0
    %1228 = vperm.xlu0 %1227, %v1190
    %v1229 = vpop.permute.xlu0 %1228
    %v1231 = vmul.f32 %v1159, %v1194
    %v1232 = vmul.f32 %v1160, %v1199
    %v1233 = vmul.f32 %v1161, %v1204
    %v1234 = vmul.f32 %v1162, %v1209
    %v1235 = vmul.f32 %v1163, %v1214
    %v1236 = vmul.f32 %v1164, %v1219
    %v1237 = vmul.f32 %v1165, %v1224
    %v1238 = vmul.f32 %v1166, %v1229
    %v1239 = vadd.f32 %v1231, %v1232
    %v1240 = vadd.f32 %v1239, %v1233
    %v1241 = vadd.f32 %v1240, %v1234
    %v1242 = vadd.f32 %v1241, %v1235
    %v1243 = vadd.f32 %v1242, %v1236
    %v1244 = vadd.f32 %v1243, %v1237
    %v1245 = vadd.f32 %v1244, %v1238
    %v1246 = vrot.slane %v1245, 4
    %v1247 = vadd.f32 %v1245, %v1246
    %v1248 = vrot.slane %v1247, 2
    %v1249 = vadd.f32 %v1247, %v1248
    %v1250 = vrot.slane %v1249, 1
    %v1251 = vadd.f32 %v1249, %v1250
    %v1252 = vmul.f32 %v1251, 0.02
    %v1253 = vsub.f32 %v1159, %v1252
    %v1254 = vsub.f32 %v1160, %v1252
    %v1255 = vsub.f32 %v1161, %v1252
    %v1256 = vsub.f32 %v1162, %v1252
    %v1257 = vsub.f32 %v1163, %v1252
    %v1258 = vsub.f32 %v1164, %v1252
    %v1259 = vsub.f32 %v1165, %v1252
    %v1260 = vsub.f32 %v1166, %v1252
    %v1261 = vmul.f32 %v1253, %v1194
    %v1262 = vmul.f32 %v1254, %v1199
    %v1263 = vmul.f32 %v1255, %v1204
    %v1264 = vmul.f32 %v1256, %v1209
    %v1265 = vmul.f32 %v1257, %v1214
    %v1266 = vmul.f32 %v1258, %v1219
    %v1267 = vmul.f32 %v1259, %v1224
    %v1268 = vmul.f32 %v1260, %v1229
    %v1269 = vmul.f32 %v1261, %v1261
    %v1270 = vmul.f32 %v1262, %v1262
    %v1271 = vmul.f32 %v1263, %v1263
    %v1272 = vmul.f32 %v1264, %v1264
    %v1273 = vmul.f32 %v1265, %v1265
    %v1274 = vmul.f32 %v1266, %v1266
    %v1275 = vmul.f32 %v1267, %v1267
    %v1276 = vmul.f32 %v1268, %v1268
    %v1277 = vadd.f32 %v1269, %v1270
    %v1278 = vadd.f32 %v1277, %v1271
    %v1279 = vadd.f32 %v1278, %v1272
    %v1280 = vadd.f32 %v1279, %v1273
    %v1281 = vadd.f32 %v1280, %v1274
    %v1282 = vadd.f32 %v1281, %v1275
    %v1283 = vadd.f32 %v1282, %v1276
    %v1284 = vrot.slane %v1283, 4
    %v1285 = vadd.f32 %v1283, %v1284
    %v1286 = vrot.slane %v1285, 2
    %v1287 = vadd.f32 %v1285, %v1286
    %v1288 = vrot.slane %v1287, 1
    %v1289 = vadd.f32 %v1287, %v1288
    %v1290 = vmul.f32 %v1289, 0.02
    %v1291 = vadd.f32 %v1290, 1e-05
    %v1292 = vrsqrt.pop %v1291
    %v1293 = vmul.f32 %v849, %v1292
    %v1294 = vmul.f32 %v1252, %v1293
    %v1295 = vsub.f32 %v850, %v1294
    %v1297 = vlaneseq
    %v1298 = vshrl.u32 %v1297, 7
    %v1299 = vsub.s32 0, %v1298
    %v1300 = vrot.slane %v1293, %v1299
    %v1302 = vmul.f32 %v1159, %v1300
    %v1303 = vmul.f32 %v1160, %v1300
    %v1304 = vmul.f32 %v1161, %v1300
    %v1305 = vmul.f32 %v1162, %v1300
    %v1306 = vmul.f32 %v1163, %v1300
    %v1307 = vmul.f32 %v1164, %v1300
    %v1308 = vmul.f32 %v1165, %v1300
    %v1309 = vmul.f32 %v1166, %v1300
    %v1311 = vlaneseq
    %v1312 = vshrl.u32 %v1311, 7
    %v1313 = vsub.s32 0, %v1312
    %v1314 = vrot.slane %v1295, %v1313
    %v1316 = vadd.f32 %v1302, %v1314
    %v1317 = vadd.f32 %v1303, %v1314
    %v1318 = vadd.f32 %v1304, %v1314
    %v1319 = vadd.f32 %v1305, %v1314
    %v1320 = vadd.f32 %v1306, %v1314
    %v1321 = vadd.f32 %v1307, %v1314
    %v1322 = vadd.f32 %v1308, %v1314
    %v1323 = vadd.f32 %v1309, %v1314
    %s1324 = smul.u32 4, 144
    %s1325 = smul.u32 %s1324, 1
    %s1326 = sshll.u32 %s1325, 4
    %1327 = dma.done %s73, %s1326
    %v1328 = vld [vmem:[#allocation3] sm:$0xff]
    %v1329 = vld [vmem:[#allocation3 + $0x8] sm:$0xff]
    %v1330 = vld [vmem:[#allocation3 + $0x10] sm:$0xff]
    %v1331 = vld [vmem:[#allocation3 + $0x18] sm:$0xff]
    %v1332 = vld [vmem:[#allocation3 + $0x20] sm:$0xff]
    %v1333 = vld [vmem:[#allocation3 + $0x28] sm:$0xff]
    %v1334 = vld [vmem:[#allocation3 + $0x30] sm:$0xff]
    %v1335 = vld [vmem:[#allocation3 + $0x38] sm:$0xff]
    %v1336 = vld [vmem:[#allocation3 + $0x40] sm:$0xff]
    %v1337 = vld [vmem:[#allocation3 + $0x48] sm:$0xff]
    %v1338 = vld [vmem:[#allocation3 + $0x50] sm:$0xff]
    %v1339 = vld [vmem:[#allocation3 + $0x58] sm:$0xff]
    %v1340 = vld [vmem:[#allocation3 + $0x60] sm:$0xff]
    %v1341 = vld [vmem:[#allocation3 + $0x68] sm:$0xff]
    %v1342 = vld [vmem:[#allocation3 + $0x70] sm:$0xff]
    %v1343 = vld [vmem:[#allocation3 + $0x78] sm:$0xff]
    %v1344 = vld [vmem:[#allocation3 + $0x80] sm:$0xff]
    %v1345 = vld [vmem:[#allocation3 + $0x88] sm:$0xff]
    %v1346 = vld [vmem:[#allocation3 + $0x90] sm:$0xff]
    %v1347 = vld [vmem:[#allocation3 + $0x98] sm:$0xff]
    %v1348 = vld [vmem:[#allocation3 + $0xa0] sm:$0xff]
    %v1349 = vld [vmem:[#allocation3 + $0xa8] sm:$0xff]
    %v1350 = vld [vmem:[#allocation3 + $0xb0] sm:$0xff]
    %v1351 = vld [vmem:[#allocation3 + $0xb8] sm:$0xff]
    %v1352 = vld [vmem:[#allocation3 + $0xc0] sm:$0xff]
    %v1353 = vld [vmem:[#allocation3 + $0xc8] sm:$0xff]
    %v1354 = vld [vmem:[#allocation3 + $0xd0] sm:$0xff]
    %v1355 = vld [vmem:[#allocation3 + $0xd8] sm:$0xff]
    %v1356 = vld [vmem:[#allocation3 + $0xe0] sm:$0xff]
    %v1357 = vld [vmem:[#allocation3 + $0xe8] sm:$0xff]
    %v1358 = vld [vmem:[#allocation3 + $0xf0] sm:$0xff]
    %v1359 = vld [vmem:[#allocation3 + $0xf8] sm:$0xff]
    %v1360 = vld [vmem:[#allocation3 + $0x100] sm:$0xff]
    %v1361 = vld [vmem:[#allocation3 + $0x108] sm:$0xff]
    %v1362 = vld [vmem:[#allocation3 + $0x110] sm:$0xff]
    %v1363 = vld [vmem:[#allocation3 + $0x118] sm:$0xff]
    %v1364 = vld [vmem:[#allocation3 + $0x120] sm:$0xff]
    %v1365 = vld [vmem:[#allocation3 + $0x128] sm:$0xff]
    %v1366 = vld [vmem:[#allocation3 + $0x130] sm:$0xff]
    %v1367 = vld [vmem:[#allocation3 + $0x138] sm:$0xff]
    %v1368 = vld [vmem:[#allocation3 + $0x140] sm:$0xff]
    %v1369 = vld [vmem:[#allocation3 + $0x148] sm:$0xff]
    %v1370 = vld [vmem:[#allocation3 + $0x150] sm:$0xff]
    %v1371 = vld [vmem:[#allocation3 + $0x158] sm:$0xff]
    %v1372 = vld [vmem:[#allocation3 + $0x160] sm:$0xff]
    %v1373 = vld [vmem:[#allocation3 + $0x168] sm:$0xff]
    %v1374 = vld [vmem:[#allocation3 + $0x170] sm:$0xff]
    %v1375 = vld [vmem:[#allocation3 + $0x178] sm:$0xff]
    %v1376 = vld [vmem:[#allocation3 + $0x180] sm:$0xff]
    %v1377 = vld [vmem:[#allocation3 + $0x188] sm:$0xff]
    %v1378 = vld [vmem:[#allocation3 + $0x190] sm:$0xff]
    %v1379 = vld [vmem:[#allocation3 + $0x198] sm:$0xff]
    %v1380 = vld [vmem:[#allocation3 + $0x1a0] sm:$0xff]
    %v1381 = vld [vmem:[#allocation3 + $0x1a8] sm:$0xff]
    %v1382 = vld [vmem:[#allocation3 + $0x1b0] sm:$0xff]
    %v1383 = vld [vmem:[#allocation3 + $0x1b8] sm:$0xff]
    %v1384 = vld [vmem:[#allocation3 + $0x1c0] sm:$0xff]
    %v1385 = vld [vmem:[#allocation3 + $0x1c8] sm:$0xff]
    %v1386 = vld [vmem:[#allocation3 + $0x1d0] sm:$0xff]
    %v1387 = vld [vmem:[#allocation3 + $0x1d8] sm:$0xff]
    %v1388 = vld [vmem:[#allocation3 + $0x1e0] sm:$0xff]
    %v1389 = vld [vmem:[#allocation3 + $0x1e8] sm:$0xff]
    %v1390 = vld [vmem:[#allocation3 + $0x1f0] sm:$0xff]
    %v1391 = vld [vmem:[#allocation3 + $0x1f8] sm:$0xff]
    %v1392 = vld [vmem:[#allocation3 + $0x200] sm:$0xff]
    %v1393 = vld [vmem:[#allocation3 + $0x208] sm:$0xff]
    %v1394 = vld [vmem:[#allocation3 + $0x210] sm:$0xff]
    %v1395 = vld [vmem:[#allocation3 + $0x218] sm:$0xff]
    %v1396 = vld [vmem:[#allocation3 + $0x220] sm:$0xff]
    %v1397 = vld [vmem:[#allocation3 + $0x228] sm:$0xff]
    %v1398 = vld [vmem:[#allocation3 + $0x230] sm:$0xff]
    %v1399 = vld [vmem:[#allocation3 + $0x238] sm:$0xff]
    %v1400 = vld [vmem:[%s12] sm:$0x1]
    %v1401 = vld [vmem:[%s13] sm:$0x1]
    %v1402 = vld [vmem:[%s14] sm:$0x1]
    %v1403 = vpack.c.bf16 %v1317, %v1316
    %v1404 = vpack.c.bf16 %v1319, %v1318
    %v1405 = vpack.c.bf16 %v1321, %v1320
    %v1406 = vpack.c.bf16 %v1323, %v1322
    %v1407 = vrot.slane %v1316, 1
    %v1408 = vrot.slane %v1317, 1
    %v1409 = vrot.slane %v1318, 1
    %v1410 = vrot.slane %v1319, 1
    %v1411 = vrot.slane %v1320, 1
    %v1412 = vrot.slane %v1321, 1
    %v1413 = vrot.slane %v1322, 1
    %v1414 = vrot.slane %v1323, 1
    %v1415 = vsel %vm317, %v1413, %v1414
    %v1416 = vsel %vm317, %v1412, %v1413
    %v1417 = vsel %vm317, %v1411, %v1412
    %v1418 = vsel %vm317, %v1410, %v1411
    %v1419 = vsel %vm317, %v1409, %v1410
    %v1420 = vsel %vm317, %v1408, %v1409
    %v1421 = vsel %vm317, %v1407, %v1408
    %v1422 = vsel %vm317, %v1414, %v1407
    %v1423 = vpack.c.bf16 %v1420, %v1421
    %v1424 = vpack.c.bf16 %v1418, %v1419
    %v1425 = vpack.c.bf16 %v1416, %v1417
    %v1426 = vpack.c.bf16 %v1422, %v1415
    %v1427 = vrot.slane %v1316, 2
    %v1428 = vrot.slane %v1317, 2
    %v1429 = vrot.slane %v1318, 2
    %v1430 = vrot.slane %v1319, 2
    %v1431 = vrot.slane %v1320, 2
    %v1432 = vrot.slane %v1321, 2
    %v1433 = vrot.slane %v1322, 2
    %v1434 = vrot.slane %v1323, 2
    %v1435 = vsel %vm338, %v1433, %v1434
    %v1436 = vsel %vm338, %v1432, %v1433
    %v1437 = vsel %vm338, %v1431, %v1432
    %v1438 = vsel %vm338, %v1430, %v1431
    %v1439 = vsel %vm338, %v1429, %v1430
    %v1440 = vsel %vm338, %v1428, %v1429
    %v1441 = vsel %vm338, %v1427, %v1428
    %v1442 = vsel %vm338, %v1434, %v1427
    %v1443 = vpack.c.bf16 %v1440, %v1441
    %v1444 = vpack.c.bf16 %v1438, %v1439
    %v1445 = vpack.c.bf16 %v1436, %v1437
    %v1446 = vpack.c.bf16 %v1442, %v1435
    %v1447 = vrot.slane %v1316, 3
    %v1448 = vrot.slane %v1317, 3
    %v1449 = vrot.slane %v1318, 3
    %v1450 = vrot.slane %v1319, 3
    %v1451 = vrot.slane %v1320, 3
    %v1452 = vrot.slane %v1321, 3
    %v1453 = vrot.slane %v1322, 3
    %v1454 = vrot.slane %v1323, 3
    %v1455 = vsel %vm903, %v1453, %v1454
    %v1456 = vsel %vm903, %v1452, %v1453
    %v1457 = vsel %vm903, %v1451, %v1452
    %v1458 = vsel %vm903, %v1450, %v1451
    %v1459 = vsel %vm903, %v1449, %v1450
    %v1460 = vsel %vm903, %v1448, %v1449
    %v1461 = vsel %vm903, %v1447, %v1448
    %v1462 = vsel %vm903, %v1454, %v1447
    %v1463 = vpack.c.bf16 %v1460, %v1461
    %v1464 = vpack.c.bf16 %v1458, %v1459
    %v1465 = vpack.c.bf16 %v1456, %v1457
    %v1466 = vpack.c.bf16 %v1462, %v1455
    %v1467 = vrot.slane %v1316, 4
    %v1468 = vrot.slane %v1317, 4
    %v1469 = vrot.slane %v1318, 4
    %v1470 = vrot.slane %v1319, 4
    %v1471 = vrot.slane %v1320, 4
    %v1472 = vrot.slane %v1321, 4
    %v1473 = vrot.slane %v1322, 4
    %v1474 = vrot.slane %v1323, 4
    %v1475 = vsel %vm924, %v1473, %v1474
    %v1476 = vsel %vm924, %v1472, %v1473
    %v1477 = vsel %vm924, %v1471, %v1472
    %v1478 = vsel %vm924, %v1470, %v1471
    %v1479 = vsel %vm924, %v1469, %v1470
    %v1480 = vsel %vm924, %v1468, %v1469
    %v1481 = vsel %vm924, %v1467, %v1468
    %v1482 = vsel %vm924, %v1474, %v1467
    %v1483 = vpack.c.bf16 %v1480, %v1481
    %v1484 = vpack.c.bf16 %v1478, %v1479
    %v1485 = vpack.c.bf16 %v1476, %v1477
    %v1486 = vpack.c.bf16 %v1482, %v1475
    %v1487 = vrot.slane %v1316, 5
    %v1488 = vrot.slane %v1317, 5
    %v1489 = vrot.slane %v1318, 5
    %v1490 = vrot.slane %v1319, 5
    %v1491 = vrot.slane %v1320, 5
    %v1492 = vrot.slane %v1321, 5
    %v1493 = vrot.slane %v1322, 5
    %v1494 = vrot.slane %v1323, 5
    %v1495 = vsel %vm945, %v1493, %v1494
    %v1496 = vsel %vm945, %v1492, %v1493
    %v1497 = vsel %vm945, %v1491, %v1492
    %v1498 = vsel %vm945, %v1490, %v1491
    %v1499 = vsel %vm945, %v1489, %v1490
    %v1500 = vsel %vm945, %v1488, %v1489
    %v1501 = vsel %vm945, %v1487, %v1488
    %v1502 = vsel %vm945, %v1494, %v1487
    %v1503 = vpack.c.bf16 %v1500, %v1501
    %v1504 = vpack.c.bf16 %v1498, %v1499
    %v1505 = vpack.c.bf16 %v1496, %v1497
    %v1506 = vpack.c.bf16 %v1502, %v1495
    %v1507 = vrot.slane %v1316, 6
    %v1508 = vrot.slane %v1317, 6
    %v1509 = vrot.slane %v1318, 6
    %v1510 = vrot.slane %v1319, 6
    %v1511 = vrot.slane %v1320, 6
    %v1512 = vrot.slane %v1321, 6
    %v1513 = vrot.slane %v1322, 6
    %v1514 = vrot.slane %v1323, 6
    %vm1515 = vcmp.lt.s32.totalorder %v316, 2
    %v1516 = vsel %vm1515, %v1513, %v1514
    %v1517 = vsel %vm1515, %v1512, %v1513
    %v1518 = vsel %vm1515, %v1511, %v1512
    %v1519 = vsel %vm1515, %v1510, %v1511
    %v1520 = vsel %vm1515, %v1509, %v1510
    %v1521 = vsel %vm1515, %v1508, %v1509
    %v1522 = vsel %vm1515, %v1507, %v1508
    %v1523 = vsel %vm1515, %v1514, %v1507
    %v1524 = vpack.c.bf16 %v1521, %v1522
    %v1525 = vpack.c.bf16 %v1519, %v1520
    %v1526 = vpack.c.bf16 %v1517, %v1518
    %v1527 = vpack.c.bf16 %v1523, %v1516
    %v1528 = vrot.slane %v1316, 7
    %v1529 = vrot.slane %v1317, 7
    %v1530 = vrot.slane %v1318, 7
    %v1531 = vrot.slane %v1319, 7
    %v1532 = vrot.slane %v1320, 7
    %v1533 = vrot.slane %v1321, 7
    %v1534 = vrot.slane %v1322, 7
    %v1535 = vrot.slane %v1323, 7
    %vm1536 = vcmp.lt.s32.totalorder %v316, 1
    %v1537 = vsel %vm1536, %v1534, %v1535
    %v1538 = vsel %vm1536, %v1533, %v1534
    %v1539 = vsel %vm1536, %v1532, %v1533
    %v1540 = vsel %vm1536, %v1531, %v1532
    %v1541 = vsel %vm1536, %v1530, %v1531
    %v1542 = vsel %vm1536, %v1529, %v1530
    %v1543 = vsel %vm1536, %v1528, %v1529
    %v1544 = vsel %vm1536, %v1535, %v1528
    %v1545 = vpack.c.bf16 %v1542, %v1543
    %v1546 = vpack.c.bf16 %v1540, %v1541
    %v1547 = vpack.c.bf16 %v1538, %v1539
    %v1548 = vpack.c.bf16 %v1544, %v1537
    %v1549 = vpack.c.bf16 %v1318, %v1317
    %v1550 = vpack.c.bf16 %v1320, %v1319
    %v1551 = vpack.c.bf16 %v1322, %v1321
    %v1552 = vpack.c.bf16 %v1316, %v1323
    %v1554 = vlaneseq
    %v1555 = vshrl.u32 %v1554, 7
    %v1556 = vsub.s32 0, %v1555
    %v1557 = vrot.slane %v1400, %v1556
    %1559 = vmatprep.subr.bf16.mxu0 0
    %1560 = vmatpush1.bf16.msra.mxu0 %v1328
    %1561 = vmatprep.subr.bf16.mxu0 0
    %1562 = vmatpush1.bf16.msra.mxu0 %v1329
    %1563 = vmatprep.subr.bf16.mxu0 0
    %1564 = vmatpush1.bf16.msra.mxu0 %v1330
    %1565 = vmatprep.subr.bf16.mxu0 0
    %1566 = vmatpush1.bf16.msra.mxu0 %v1331
    %1567 = vmatprep.subr.bf16.mxu0 0
    %1568 = vmatpush1.bf16.msra.mxu0 %v1332
    %1569 = vmatprep.subr.bf16.mxu0 0
    %1570 = vmatpush1.bf16.msra.mxu0 %v1333
    %1571 = vmatprep.subr.bf16.mxu0 0
    %1572 = vmatpush1.bf16.msra.mxu0 %v1334
    %1573 = vmatprep.subr.bf16.mxu0 0
    %1574 = vmatpush1.bf16.msra.mxu0 %v1335
    %1575 = vmatprep.subr.bf16.mxu0 0
    %1576 = vmatpush1.bf16.msra.mxu0 %v1336
    %1577 = vmatprep.subr.bf16.mxu0 0
    %1578 = vmatpush1.bf16.msra.mxu0 %v1337
    %1579 = vmatprep.subr.bf16.mxu0 0
    %1580 = vmatpush1.bf16.msra.mxu0 %v1338
    %1581 = vmatprep.subr.bf16.mxu0 0
    %1582 = vmatpush1.bf16.msra.mxu0 %v1339
    %1583 = vmatprep.subr.bf16.mxu0 0
    %1584 = vmatpush1.bf16.msra.mxu0 %v1340
    %1585 = vmatprep.subr.bf16.mxu0 0
    %1586 = vmatpush1.bf16.msra.mxu0 %v1341
    %1587 = vmatprep.subr.bf16.mxu0 0
    %1588 = vmatpush1.bf16.msra.mxu0 %v1342
    %1589 = vmatprep.subr.bf16.mxu0 0
    %1590 = vmatpush1.bf16.msra.mxu0 %v1343
    %1591 = vmatprep.mubr.bf16.mxu0 %v1423
    %1592 = vmatmul.mubr.bf16.gmra.mrb[0].mxu0 %v1403
    %v1593 = vpop.f32.mrb[0].mxu0
    %v1594 = vadd.f32 %v1557, %v1593
    %v1595 = vpop.f32.mrb[0].mxu0
    %v1596 = vpop.f32.mrb[0].mxu0
    %v1597 = vadd.f32 %v1557, %v1596
    %v1598 = vpop.f32.mrb[0].mxu0
    %1599 = vmatprep.mubr.bf16.mxu0 %v1424
    %1600 = vmatmul.mubr.bf16.gmra.mrb[0].mxu0 %v1404
    %v1601 = vpop.f32.mrb[0].mxu0
    %v1602 = vadd.f32 %v1557, %v1601
    %v1603 = vpop.f32.mrb[0].mxu0
    %v1604 = vpop.f32.mrb[0].mxu0
    %v1605 = vadd.f32 %v1557, %v1604
    %v1606 = vpop.f32.mrb[0].mxu0
    %1607 = vmatprep.mubr.bf16.mxu0 %v1425
    %1608 = vmatmul.mubr.bf16.gmra.mrb[0].mxu0 %v1405
    %v1609 = vpop.f32.mrb[0].mxu0
    %v1610 = vadd.f32 %v1557, %v1609
    %v1611 = vpop.f32.mrb[0].mxu0
    %v1612 = vpop.f32.mrb[0].mxu0
    %v1613 = vadd.f32 %v1557, %v1612
    %v1614 = vpop.f32.mrb[0].mxu0
    %1615 = vmatprep.mubr.bf16.mxu0 %v1426
    %1616 = vmatmul.mubr.bf16.gmra.mrb[0].mxu0 %v1406
    %v1617 = vpop.f32.mrb[0].mxu0
    %v1618 = vadd.f32 %v1557, %v1617
    %v1619 = vpop.f32.mrb[0].mxu0
    %v1620 = vpop.f32.mrb[0].mxu0
    %v1621 = vadd.f32 %v1557, %v1620
    %v1622 = vpop.f32.mrb[0].mxu0
    %1623 = vdwg.mxu0
    %1624 = vmatprep.subr.bf16.mxu0 0
    %1625 = vmatpush1.bf16.msra.mxu0 %v1344
    %1626 = vmatprep.subr.bf16.mxu0 0
    %1627 = vmatpush1.bf16.msra.mxu0 %v1345
    %1628 = vmatprep.subr.bf16.mxu0 0
    %1629 = vmatpush1.bf16.msra.mxu0 %v1346
    %1630 = vmatprep.subr.bf16.mxu0 0
    %1631 = vmatpush1.bf16.msra.mxu0 %v1347
    %1632 = vmatprep.subr.bf16.mxu0 0
    %1633 = vmatpush1.bf16.msra.mxu0 %v1348
    %1634 = vmatprep.subr.bf16.mxu0 0
    %1635 = vmatpush1.bf16.msra.mxu0 %v1349
    %1636 = vmatprep.subr.bf16.mxu0 0
    %1637 = vmatpush1.bf16.msra.mxu0 %v1350
    %1638 = vmatprep.subr.bf16.mxu0 0
    %1639 = vmatpush1.bf16.msra.mxu0 %v1351
    %1640 = vmatprep.subr.bf16.mxu0 0
    %1641 = vmatpush1.bf16.msra.mxu0 %v1352
    %1642 = vmatprep.subr.bf16.mxu0 0
    %1643 = vmatpush1.bf16.msra.mxu0 %v1353
    %1644 = vmatprep.subr.bf16.mxu0 0
    %1645 = vmatpush1.bf16.msra.mxu0 %v1354
    %1646 = vmatprep.subr.bf16.mxu0 0
    %1647 = vmatpush1.bf16.msra.mxu0 %v1355
    %1648 = vmatprep.subr.bf16.mxu0 0
    %1649 = vmatpush1.bf16.msra.mxu0 %v1356
    %1650 = vmatprep.subr.bf16.mxu0 0
    %1651 = vmatpush1.bf16.msra.mxu0 %v1357
    %1652 = vmatprep.subr.bf16.mxu0 0
    %1653 = vmatpush1.bf16.msra.mxu0 %v1358
    %1654 = vmatprep.subr.bf16.mxu0 0
    %1655 = vmatpush1.bf16.msra.mxu0 %v1359
    %1656 = vmatprep.mubr.bf16.mxu0 %v1463
    %1657 = vmatmul.mubr.bf16.gmra.mrb[0].mxu0 %v1443
    %v1658 = vpop.f32.mrb[0].mxu0
    %v1659 = vadd.f32 %v1594, %v1658
    %v1660 = vpop.f32.mrb[0].mxu0
    %v1661 = vpop.f32.mrb[0].mxu0
    %v1662 = vadd.f32 %v1597, %v1661
    %v1663 = vpop.f32.mrb[0].mxu0
    %1664 = vmatprep.mubr.bf16.mxu0 %v1464
    %1665 = vmatmul.mubr.bf16.gmra.mrb[0].mxu0 %v1444
    %v1666 = vpop.f32.mrb[0].mxu0
    %v1667 = vadd.f32 %v1602, %v1666
    %v1668 = vpop.f32.mrb[0].mxu0
    %v1669 = vpop.f32.mrb[0].mxu0
    %v1670 = vadd.f32 %v1605, %v1669
    %v1671 = vpop.f32.mrb[0].mxu0
    %1672 = vmatprep.mubr.bf16.mxu0 %v1465
    %1673 = vmatmul.mubr.bf16.gmra.mrb[0].mxu0 %v1445
    %v1674 = vpop.f32.mrb[0].mxu0
    %v1675 = vadd.f32 %v1610, %v1674
    %v1676 = vpop.f32.mrb[0].mxu0
    %v1677 = vpop.f32.mrb[0].mxu0
    %v1678 = vadd.f32 %v1613, %v1677
    %v1679 = vpop.f32.mrb[0].mxu0
    %1680 = vmatprep.mubr.bf16.mxu0 %v1466
    %1681 = vmatmul.mubr.bf16.gmra.mrb[0].mxu0 %v1446
    %v1682 = vpop.f32.mrb[0].mxu0
    %v1683 = vadd.f32 %v1618, %v1682
    %v1684 = vpop.f32.mrb[0].mxu0
    %v1685 = vpop.f32.mrb[0].mxu0
    %v1686 = vadd.f32 %v1621, %v1685
    %v1687 = vpop.f32.mrb[0].mxu0
    %1688 = vdwg.mxu0
    %1689 = vmatprep.subr.bf16.mxu0 0
    %1690 = vmatpush1.bf16.msra.mxu0 %v1360
    %1691 = vmatprep.subr.bf16.mxu0 0
    %1692 = vmatpush1.bf16.msra.mxu0 %v1361
    %1693 = vmatprep.subr.bf16.mxu0 0
    %1694 = vmatpush1.bf16.msra.mxu0 %v1362
    %1695 = vmatprep.subr.bf16.mxu0 0
    %1696 = vmatpush1.bf16.msra.mxu0 %v1363
    %1697 = vmatprep.subr.bf16.mxu0 0
    %1698 = vmatpush1.bf16.msra.mxu0 %v1364
    %1699 = vmatprep.subr.bf16.mxu0 0
    %1700 = vmatpush1.bf16.msra.mxu0 %v1365
    %1701 = vmatprep.subr.bf16.mxu0 0
    %1702 = vmatpush1.bf16.msra.mxu0 %v1366
    %1703 = vmatprep.subr.bf16.mxu0 0
    %1704 = vmatpush1.bf16.msra.mxu0 %v1367
    %1705 = vmatprep.subr.bf16.mxu0 0
    %1706 = vmatpush1.bf16.msra.mxu0 %v1368
    %1707 = vmatprep.subr.bf16.mxu0 0
    %1708 = vmatpush1.bf16.msra.mxu0 %v1369
    %1709 = vmatprep.subr.bf16.mxu0 0
    %1710 = vmatpush1.bf16.msra.mxu0 %v1370
    %1711 = vmatprep.subr.bf16.mxu0 0
    %1712 = vmatpush1.bf16.msra.mxu0 %v1371
    %1713 = vmatprep.subr.bf16.mxu0 0
    %1714 = vmatpush1.bf16.msra.mxu0 %v1372
    %1715 = vmatprep.subr.bf16.mxu0 0
    %1716 = vmatpush1.bf16.msra.mxu0 %v1373
    %1717 = vmatprep.subr.bf16.mxu0 0
    %1718 = vmatpush1.bf16.msra.mxu0 %v1374
    %1719 = vmatprep.subr.bf16.mxu0 0
    %1720 = vmatpush1.bf16.msra.mxu0 %v1375
    %1721 = vmatprep.mubr.bf16.mxu0 %v1503
    %1722 = vmatmul.mubr.bf16.gmra.mrb[0].mxu0 %v1483
    %v1723 = vpop.f32.mrb[0].mxu0
    %v1724 = vadd.f32 %v1659, %v1723
    %v1725 = vpop.f32.mrb[0].mxu0
    %v1726 = vpop.f32.mrb[0].mxu0
    %v1727 = vadd.f32 %v1662, %v1726
    %v1728 = vpop.f32.mrb[0].mxu0
    %1729 = vmatprep.mubr.bf16.mxu0 %v1504
    %1730 = vmatmul.mubr.bf16.gmra.mrb[0].mxu0 %v1484
    %v1731 = vpop.f32.mrb[0].mxu0
    %v1732 = vadd.f32 %v1667, %v1731
    %v1733 = vpop.f32.mrb[0].mxu0
    %v1734 = vpop.f32.mrb[0].mxu0
    %v1735 = vadd.f32 %v1670, %v1734
    %v1736 = vpop.f32.mrb[0].mxu0
    %1737 = vmatprep.mubr.bf16.mxu0 %v1505
    %1738 = vmatmul.mubr.bf16.gmra.mrb[0].mxu0 %v1485
    %v1739 = vpop.f32.mrb[0].mxu0
    %v1740 = vadd.f32 %v1675, %v1739
    %v1741 = vpop.f32.mrb[0].mxu0
    %v1742 = vpop.f32.mrb[0].mxu0
    %v1743 = vadd.f32 %v1678, %v1742
    %v1744 = vpop.f32.mrb[0].mxu0
    %1745 = vmatprep.mubr.bf16.mxu0 %v1506
    %1746 = vmatmul.mubr.bf16.gmra.mrb[0].mxu0 %v1486
    %v1747 = vpop.f32.mrb[0].mxu0
    %v1748 = vadd.f32 %v1683, %v1747
    %v1749 = vpop.f32.mrb[0].mxu0
    %v1750 = vpop.f32.mrb[0].mxu0
    %v1751 = vadd.f32 %v1686, %v1750
    %v1752 = vpop.f32.mrb[0].mxu0
    %1753 = vdwg.mxu0
    %1754 = vmatprep.subr.bf16.mxu0 0
    %1755 = vmatpush1.bf16.msra.mxu0 %v1376
    %1756 = vmatprep.subr.bf16.mxu0 0
    %1757 = vmatpush1.bf16.msra.mxu0 %v1377
    %1758 = vmatprep.subr.bf16.mxu0 0
    %1759 = vmatpush1.bf16.msra.mxu0 %v1378
    %1760 = vmatprep.subr.bf16.mxu0 0
    %1761 = vmatpush1.bf16.msra.mxu0 %v1379
    %1762 = vmatprep.subr.bf16.mxu0 0
    %1763 = vmatpush1.bf16.msra.mxu0 %v1380
    %1764 = vmatprep.subr.bf16.mxu0 0
    %1765 = vmatpush1.bf16.msra.mxu0 %v1381
    %1766 = vmatprep.subr.bf16.mxu0 0
    %1767 = vmatpush1.bf16.msra.mxu0 %v1382
    %1768 = vmatprep.subr.bf16.mxu0 0
    %1769 = vmatpush1.bf16.msra.mxu0 %v1383
    %1770 = vmatprep.subr.bf16.mxu0 0
    %1771 = vmatpush1.bf16.msra.mxu0 %v1384
    %1772 = vmatprep.subr.bf16.mxu0 0
    %1773 = vmatpush1.bf16.msra.mxu0 %v1385
    %1774 = vmatprep.subr.bf16.mxu0 0
    %1775 = vmatpush1.bf16.msra.mxu0 %v1386
    %1776 = vmatprep.subr.bf16.mxu0 0
    %1777 = vmatpush1.bf16.msra.mxu0 %v1387
    %1778 = vmatprep.subr.bf16.mxu0 0
    %1779 = vmatpush1.bf16.msra.mxu0 %v1388
    %1780 = vmatprep.subr.bf16.mxu0 0
    %1781 = vmatpush1.bf16.msra.mxu0 %v1389
    %1782 = vmatprep.subr.bf16.mxu0 0
    %1783 = vmatpush1.bf16.msra.mxu0 %v1390
    %1784 = vmatprep.subr.bf16.mxu0 0
    %1785 = vmatpush1.bf16.msra.mxu0 %v1391
    %1786 = vmatprep.mubr.bf16.mxu0 %v1545
    %1787 = vmatmul.mubr.bf16.gmra.mrb[0].mxu0 %v1524
    %v1788 = vpop.f32.mrb[0].mxu0
    %v1789 = vadd.f32 %v1724, %v1788
    %v1790 = vpop.f32.mrb[0].mxu0
    %v1791 = vpop.f32.mrb[0].mxu0
    %v1792 = vadd.f32 %v1727, %v1791
    %v1793 = vpop.f32.mrb[0].mxu0
    %1794 = vmatprep.mubr.bf16.mxu0 %v1546
    %1795 = vmatmul.mubr.bf16.gmra.mrb[0].mxu0 %v1525
    %v1796 = vpop.f32.mrb[0].mxu0
    %v1797 = vadd.f32 %v1732, %v1796
    %v1798 = vpop.f32.mrb[0].mxu0
    %v1799 = vpop.f32.mrb[0].mxu0
    %v1800 = vadd.f32 %v1735, %v1799
    %v1801 = vpop.f32.mrb[0].mxu0
    %1802 = vmatprep.mubr.bf16.mxu0 %v1547
    %1803 = vmatmul.mubr.bf16.gmra.mrb[0].mxu0 %v1526
    %v1804 = vpop.f32.mrb[0].mxu0
    %v1805 = vadd.f32 %v1740, %v1804
    %v1806 = vpop.f32.mrb[0].mxu0
    %v1807 = vpop.f32.mrb[0].mxu0
    %v1808 = vadd.f32 %v1743, %v1807
    %v1809 = vpop.f32.mrb[0].mxu0
    %1810 = vmatprep.mubr.bf16.mxu0 %v1548
    %1811 = vmatmul.mubr.bf16.gmra.mrb[0].mxu0 %v1527
    %v1812 = vpop.f32.mrb[0].mxu0
    %v1813 = vadd.f32 %v1748, %v1812
    %v1814 = vpop.f32.mrb[0].mxu0
    %v1815 = vpop.f32.mrb[0].mxu0
    %v1816 = vadd.f32 %v1751, %v1815
    %v1817 = vpop.f32.mrb[0].mxu0
    %1818 = vdwg.mxu0
    %1819 = vmatprep.subr.bf16.mxu0 0
    %1820 = vmatpush1.bf16.msra.mxu0 %v1392
    %1821 = vmatprep.subr.bf16.mxu0 0
    %1822 = vmatpush1.bf16.msra.mxu0 %v1393
    %1823 = vmatprep.subr.bf16.mxu0 0
    %1824 = vmatpush1.bf16.msra.mxu0 %v1394
    %1825 = vmatprep.subr.bf16.mxu0 0
    %1826 = vmatpush1.bf16.msra.mxu0 %v1395
    %1827 = vmatprep.subr.bf16.mxu0 0
    %1828 = vmatpush1.bf16.msra.mxu0 %v1396
    %1829 = vmatprep.subr.bf16.mxu0 0
    %1830 = vmatpush1.bf16.msra.mxu0 %v1397
    %1831 = vmatprep.subr.bf16.mxu0 0
    %1832 = vmatpush1.bf16.msra.mxu0 %v1398
    %1833 = vmatprep.subr.bf16.mxu0 0
    %1834 = vmatpush1.bf16.msra.mxu0 %v1399
    %1835 = vmatprep.subr.bf16.mxu0 0
    %1836 = vmatpush1.bf16.msra.mxu0 0
    %1837 = vmatprep.subr.bf16.mxu0 0
    %1838 = vmatpush1.bf16.msra.mxu0 0
    %1839 = vmatprep.subr.bf16.mxu0 0
    %1840 = vmatpush1.bf16.msra.mxu0 0
    %1841 = vmatprep.subr.bf16.mxu0 0
    %1842 = vmatpush1.bf16.msra.mxu0 0
    %1843 = vmatprep.subr.bf16.mxu0 0
    %1844 = vmatpush1.bf16.msra.mxu0 0
    %1845 = vmatprep.subr.bf16.mxu0 0
    %1846 = vmatpush1.bf16.msra.mxu0 0
    %1847 = vmatprep.subr.bf16.mxu0 0
    %1848 = vmatpush1.bf16.msra.mxu0 0
    %1849 = vmatprep.subr.bf16.mxu0 0
    %1850 = vmatpush1.bf16.msra.mxu0 0
    %1851 = vmatprep.mubr.bf16.mxu0 0
    %1852 = vmatmul.mubr.bf16.gmra.mrb[0].mxu0 %v1549
    %v1853 = vpop.f32.mrb[0].mxu0
    %v1854 = vadd.f32 %v1789, %v1853
    %v1855 = vpop.f32.mrb[0].mxu0
    %v1856 = vpop.f32.mrb[0].mxu0
    %v1857 = vadd.f32 %v1792, %v1856
    %v1858 = vpop.f32.mrb[0].mxu0
    %1859 = vmatprep.mubr.bf16.mxu0 0
    %1860 = vmatmul.mubr.bf16.gmra.mrb[0].mxu0 %v1550
    %v1861 = vpop.f32.mrb[0].mxu0
    %v1862 = vadd.f32 %v1797, %v1861
    %v1863 = vpop.f32.mrb[0].mxu0
    %v1864 = vpop.f32.mrb[0].mxu0
    %v1865 = vadd.f32 %v1800, %v1864
    %v1866 = vpop.f32.mrb[0].mxu0
    %1867 = vmatprep.mubr.bf16.mxu0 0
    %1868 = vmatmul.mubr.bf16.gmra.mrb[0].mxu0 %v1551
    %v1869 = vpop.f32.mrb[0].mxu0
    %v1870 = vadd.f32 %v1805, %v1869
    %v1871 = vpop.f32.mrb[0].mxu0
    %v1872 = vpop.f32.mrb[0].mxu0
    %v1873 = vadd.f32 %v1808, %v1872
    %v1874 = vpop.f32.mrb[0].mxu0
    %1875 = vmatprep.mubr.bf16.mxu0 0
    %1876 = vmatmul.mubr.bf16.gmra.mrb[0].mxu0 %v1552
    %v1877 = vpop.f32.mrb[0].mxu0
    %v1878 = vadd.f32 %v1813, %v1877
    %v1879 = vpop.f32.mrb[0].mxu0
    %v1880 = vpop.f32.mrb[0].mxu0
    %v1881 = vadd.f32 %v1816, %v1880
    %v1882 = vpop.f32.mrb[0].mxu0
    %1883 = vdwg.mxu0
    %v1884 = vmax.f32 %v1854, 0.0
    %v1885 = vmax.f32 %v1857, 0.0
    %v1886 = vmax.f32 %v1862, 0.0
    %v1887 = vmax.f32 %v1865, 0.0
    %v1888 = vmax.f32 %v1870, 0.0
    %v1889 = vmax.f32 %v1873, 0.0
    %v1890 = vmax.f32 %v1878, 0.0
    %v1891 = vmax.f32 %v1881, 0.0
    %vm1892 = vcmp.lt.s32.totalorder %v85, 17
    %vm1893 = vcmp.lt.s32.totalorder %v86, 17
    %vm1894 = vcmp.lt.s32.totalorder %v87, 17
    %vm1895 = vcmp.lt.s32.totalorder %v88, 17
    %vm1896 = vcmp.lt.s32.totalorder %v89, 17
    %vm1897 = vcmp.lt.s32.totalorder %v90, 17
    %vm1898 = vcmp.lt.s32.totalorder %v91, 17
    %vm1899 = vcmp.lt.s32.totalorder %v92, 17
    %v1900 = vsel %vm1892, 1, 0
    %v1901 = vsel %vm1893, 1, 0
    %v1902 = vsel %vm1894, 1, 0
    %v1903 = vsel %vm1895, 1, 0
    %v1904 = vsel %vm1896, 1, 0
    %v1905 = vsel %vm1897, 1, 0
    %v1906 = vsel %vm1898, 1, 0
    %v1907 = vsel %vm1899, 1, 0
    %v1908 = vcvt.s32.f32 %v1900
    %v1909 = vcvt.s32.f32 %v1901
    %v1910 = vcvt.s32.f32 %v1902
    %v1911 = vcvt.s32.f32 %v1903
    %v1912 = vcvt.s32.f32 %v1904
    %v1913 = vcvt.s32.f32 %v1905
    %v1914 = vcvt.s32.f32 %v1906
    %v1915 = vcvt.s32.f32 %v1907
    %1917 = vset.pattern.permute.xlu0 0
    %1918 = vperm.xlu0 %1917, %v1908
    %v1919 = vpop.permute.xlu0 %1918
    %1922 = vset.pattern.permute.xlu0 0
    %1923 = vperm.xlu0 %1922, %v1909
    %v1924 = vpop.permute.xlu0 %1923
    %1927 = vset.pattern.permute.xlu0 0
    %1928 = vperm.xlu0 %1927, %v1910
    %v1929 = vpop.permute.xlu0 %1928
    %1932 = vset.pattern.permute.xlu0 0
    %1933 = vperm.xlu0 %1932, %v1911
    %v1934 = vpop.permute.xlu0 %1933
    %1937 = vset.pattern.permute.xlu0 0
    %1938 = vperm.xlu0 %1937, %v1912
    %v1939 = vpop.permute.xlu0 %1938
    %1942 = vset.pattern.permute.xlu0 0
    %1943 = vperm.xlu0 %1942, %v1913
    %v1944 = vpop.permute.xlu0 %1943
    %1947 = vset.pattern.permute.xlu0 0
    %1948 = vperm.xlu0 %1947, %v1914
    %v1949 = vpop.permute.xlu0 %1948
    %1952 = vset.pattern.permute.xlu0 0
    %1953 = vperm.xlu0 %1952, %v1915
    %v1954 = vpop.permute.xlu0 %1953
    %v1956 = vmul.f32 %v1884, %v1919
    %v1957 = vmul.f32 %v1885, %v1924
    %v1958 = vmul.f32 %v1886, %v1929
    %v1959 = vmul.f32 %v1887, %v1934
    %v1960 = vmul.f32 %v1888, %v1939
    %v1961 = vmul.f32 %v1889, %v1944
    %v1962 = vmul.f32 %v1890, %v1949
    %v1963 = vmul.f32 %v1891, %v1954
    %v1964 = vadd.f32 %v1956, %v1957
    %v1965 = vadd.f32 %v1964, %v1958
    %v1966 = vadd.f32 %v1965, %v1959
    %v1967 = vadd.f32 %v1966, %v1960
    %v1968 = vadd.f32 %v1967, %v1961
    %v1969 = vadd.f32 %v1968, %v1962
    %v1970 = vadd.f32 %v1969, %v1963
    %v1971 = vrot.slane %v1970, 4
    %v1972 = vadd.f32 %v1970, %v1971
    %v1973 = vrot.slane %v1972, 2
    %v1974 = vadd.f32 %v1972, %v1973
    %v1975 = vrot.slane %v1974, 1
    %v1976 = vadd.f32 %v1974, %v1975
    %v1977 = vmul.f32 %v1976, 0.029411765
    %v1978 = vsub.f32 %v1884, %v1977
    %v1979 = vsub.f32 %v1885, %v1977
    %v1980 = vsub.f32 %v1886, %v1977
    %v1981 = vsub.f32 %v1887, %v1977
    %v1982 = vsub.f32 %v1888, %v1977
    %v1983 = vsub.f32 %v1889, %v1977
    %v1984 = vsub.f32 %v1890, %v1977
    %v1985 = vsub.f32 %v1891, %v1977
    %v1986 = vmul.f32 %v1978, %v1919
    %v1987 = vmul.f32 %v1979, %v1924
    %v1988 = vmul.f32 %v1980, %v1929
    %v1989 = vmul.f32 %v1981, %v1934
    %v1990 = vmul.f32 %v1982, %v1939
    %v1991 = vmul.f32 %v1983, %v1944
    %v1992 = vmul.f32 %v1984, %v1949
    %v1993 = vmul.f32 %v1985, %v1954
    %v1994 = vmul.f32 %v1986, %v1986
    %v1995 = vmul.f32 %v1987, %v1987
    %v1996 = vmul.f32 %v1988, %v1988
    %v1997 = vmul.f32 %v1989, %v1989
    %v1998 = vmul.f32 %v1990, %v1990
    %v1999 = vmul.f32 %v1991, %v1991
    %v2000 = vmul.f32 %v1992, %v1992
    %v2001 = vmul.f32 %v1993, %v1993
    %v2002 = vadd.f32 %v1994, %v1995
    %v2003 = vadd.f32 %v2002, %v1996
    %v2004 = vadd.f32 %v2003, %v1997
    %v2005 = vadd.f32 %v2004, %v1998
    %v2006 = vadd.f32 %v2005, %v1999
    %v2007 = vadd.f32 %v2006, %v2000
    %v2008 = vadd.f32 %v2007, %v2001
    %v2009 = vrot.slane %v2008, 4
    %v2010 = vadd.f32 %v2008, %v2009
    %v2011 = vrot.slane %v2010, 2
    %v2012 = vadd.f32 %v2010, %v2011
    %v2013 = vrot.slane %v2012, 1
    %v2014 = vadd.f32 %v2012, %v2013
    %v2015 = vmul.f32 %v2014, 0.029411765
    %v2016 = vadd.f32 %v2015, 1e-05
    %v2017 = vrsqrt.pop %v2016
    %v2018 = vmul.f32 %v1401, %v2017
    %v2019 = vmul.f32 %v1977, %v2018
    %v2020 = vsub.f32 %v1402, %v2019
    %v2022 = vlaneseq
    %v2023 = vshrl.u32 %v2022, 7
    %v2024 = vsub.s32 0, %v2023
    %v2025 = vrot.slane %v2018, %v2024
    %v2027 = vmul.f32 %v1884, %v2025
    %v2028 = vmul.f32 %v1885, %v2025
    %v2029 = vmul.f32 %v1886, %v2025
    %v2030 = vmul.f32 %v1887, %v2025
    %v2031 = vmul.f32 %v1888, %v2025
    %v2032 = vmul.f32 %v1889, %v2025
    %v2033 = vmul.f32 %v1890, %v2025
    %v2034 = vmul.f32 %v1891, %v2025
    %v2036 = vlaneseq
    %v2037 = vshrl.u32 %v2036, 7
    %v2038 = vsub.s32 0, %v2037
    %v2039 = vrot.slane %v2020, %v2038
    %v2041 = vadd.f32 %v2027, %v2039
    %v2042 = vadd.f32 %v2028, %v2039
    %v2043 = vadd.f32 %v2029, %v2039
    %v2044 = vadd.f32 %v2030, %v2039
    %v2045 = vadd.f32 %v2031, %v2039
    %v2046 = vadd.f32 %v2032, %v2039
    %v2047 = vadd.f32 %v2033, %v2039
    %v2048 = vadd.f32 %v2034, %v2039
    %2049 = vset.pattern.permute.xlu0 0
    %2050 = vperm.xlu0 %2049, %v1900
    %v2051 = vpop.permute.xlu0 %2050
    %2052 = vset.pattern.permute.xlu0 0
    %2053 = vperm.xlu0 %2052, %v1901
    %v2054 = vpop.permute.xlu0 %2053
    %2055 = vset.pattern.permute.xlu0 0
    %2056 = vperm.xlu0 %2055, %v1902
    %v2057 = vpop.permute.xlu0 %2056
    %2058 = vset.pattern.permute.xlu0 0
    %2059 = vperm.xlu0 %2058, %v1903
    %v2060 = vpop.permute.xlu0 %2059
    %2061 = vset.pattern.permute.xlu0 0
    %2062 = vperm.xlu0 %2061, %v1904
    %v2063 = vpop.permute.xlu0 %2062
    %2064 = vset.pattern.permute.xlu0 0
    %2065 = vperm.xlu0 %2064, %v1905
    %v2066 = vpop.permute.xlu0 %2065
    %2067 = vset.pattern.permute.xlu0 0
    %2068 = vperm.xlu0 %2067, %v1906
    %v2069 = vpop.permute.xlu0 %2068
    %2070 = vset.pattern.permute.xlu0 0
    %2071 = vperm.xlu0 %2070, %v1907
    %v2072 = vpop.permute.xlu0 %2071
    %vm2073 = vcmp.eq.s32.totalorder %v2051, 1
    %vm2074 = vcmp.eq.s32.totalorder %v2054, 1
    %vm2075 = vcmp.eq.s32.totalorder %v2057, 1
    %vm2076 = vcmp.eq.s32.totalorder %v2060, 1
    %vm2077 = vcmp.eq.s32.totalorder %v2063, 1
    %vm2078 = vcmp.eq.s32.totalorder %v2066, 1
    %vm2079 = vcmp.eq.s32.totalorder %v2069, 1
    %vm2080 = vcmp.eq.s32.totalorder %v2072, 1
    %v2081 = vsel %vm2073, %v2041, -inf
    %v2082 = vsel %vm2074, %v2042, -inf
    %v2083 = vsel %vm2075, %v2043, -inf
    %v2084 = vsel %vm2076, %v2044, -inf
    %v2085 = vsel %vm2077, %v2045, -inf
    %v2086 = vsel %vm2078, %v2046, -inf
    %v2087 = vsel %vm2079, %v2047, -inf
    %v2088 = vsel %vm2080, %v2048, -inf
    %v2089 = vmax.f32 %v2081, %v2083
    %v2090 = vmax.f32 %v2082, %v2084
    %v2091 = vmax.f32 %v2089, %v2090
    %v2092 = vrot.slane %v2091, 4
    %v2093 = vmax.f32 %v2091, %v2092
    %v2094 = vrot.slane %v2093, 2
    %v2095 = vmax.f32 %v2093, %v2094
    %v2096 = vrot.slane %v2095, 1
    %v2097 = vmax.f32 %v2095, %v2096
    %v2098 = vmax.f32 %v2085, %v2087
    %v2099 = vmax.f32 %v2086, %v2088
    %v2100 = vmax.f32 %v2098, %v2099
    %v2101 = vrot.slane %v2100, 4
    %v2102 = vmax.f32 %v2100, %v2101
    %v2103 = vrot.slane %v2102, 2
    %v2104 = vmax.f32 %v2102, %v2103
    %v2105 = vrot.slane %v2104, 1
    %v2106 = vmax.f32 %v2104, %v2105
    %vm2109 = vcmask 1041409
    %v2110 = vsel %vm2109, %v2106, %v2097
    %2112 = vst [vmem:[#allocation8] sm:$0x3] %v2110
    // Predicated region
    $region66: #{target_representation.1} parent=1 // pred_check
      _
    $region67: #{target_representation.1} parent=1 // pred_check_branch
      %2114 = sbr.rel (0) target = $region69
    $region68: #{target_representation.1} parent=1 // pred_region
      %s2116 = ssub.s32 32, 32
      %2117 = vsyncadd [#allocation7], %s2116
      %s2119 = sshll.u32 [#allocation8], 4
      %s2120 = int_to_ptr.vmem [resolvable:$true] %s2119
      %2122 = dma.vmem_to_hbm [thread:$0]  %s2120, 32, %s15, [#allocation7]
    $region69: #{target_representation.1} parent=1 // pred_fallthru
      _
    // Predicated region
    $region70: #{target_representation.1} parent=1 // pred_check
      _
    $region71: #{target_representation.1} parent=1 // pred_check_branch
      %2124 = sbr.rel (0) target = $region73
    $region72: #{target_representation.1} parent=1 // pred_region
      %2125 = dma.done [#allocation7], 32
    $region73: #{target_representation.1} parent=1 // pred_fallthru
      _
    %2126 = vsyncpa [#allocation6], 1
    %2127 = vsyncpa [#allocation7], 1
  %2128 = vsyncmov [#allocation4]
  %s2129 = vpop.sfrf %2128
  %p2130 = scmp.eq.s32.totalorder %s2129, 0
  %p2131 = pneg %p2130
  %2133 = shalt.err (%p2131)
  %s2134 = scalar_lea.sflag [#allocation4], 1
  %2135 = vsyncmov %s2134
  %s2136 = vpop.sfrf %2135
  %p2137 = scmp.eq.s32.totalorder %s2136, 0
  %p2138 = pneg %p2137
  %2140 = shalt.err (%p2138)

</llo_original>
